<compile_context>
chip_gen: v7x
topology: tpu7x:2x2x1
jax: 0.10.0
libtpu: 0.0.40
codegen_flags: <defaults>
</compile_context>

<pallas_src>
import jax
import jax.numpy as jnp
from jax.experimental import pallas as pl
from jax.experimental.pallas import tpu as pltpu


def _round_up(x, m):
    return ((x + m - 1) // m) * m


def _sae_fwd_kernel(h_ref, w_enc_ref, w_dec_sp_ref, b_enc_ref, b_dec_ref, out_ref):
    # Packed per-block views (I = n_inst, D = d_in, S = d_sae):
    #   h_ref:        (bb, I*D)          flattened hidden acts, lane = i*D + d
    #   w_enc_ref:    (I*D, I*S)         block-diagonal encoder weights
    #   w_dec_sp_ref: (I*S, I*D + I)     [block-diag decoder | per-inst L1 selector]
    #   b_enc_ref:    (1, I*S)
    #   b_dec_ref:    (1, I*D)
    #   out_ref:      (bb, W>=128)       [acts | h_rec | L_rec | L_sp | zero pad]
    bb, d_in_f = h_ref.shape
    d_sae_f = w_enc_ref.shape[1]
    n_i = w_dec_sp_ref.shape[1] - d_in_f
    d_in = d_in_f // n_i
    f32 = jnp.float32
    hp = jax.lax.Precision.HIGHEST          # fp32 contraction on the MXU

    h = h_ref[...]
    b_dec = b_dec_ref[...]
    h_cent = h - b_dec                                          # (bb, I*D)

    # ---- encode: one MXU matmul + bias + ReLU --------------------------------
    pre = jnp.dot(h_cent, w_enc_ref[...], precision=hp,
                  preferred_element_type=f32) + b_enc_ref[...]
    acts = jnp.maximum(pre, 0.0)                                # (bb, I*S)

    # ---- decode + per-instance L1 fused into ONE MXU matmul ------------------
    dec = jnp.dot(acts, w_dec_sp_ref[...], precision=hp,
                  preferred_element_type=f32)                   # (bb, I*D + I)
    rec_c = dec[:, :d_in_f]                                     # == h_rec - b_dec
    l_sp = dec[:, d_in_f:]                                      # |acts| == acts post-ReLU
    h_rec = rec_c + b_dec

    # ---- reconstruction loss: (h_rec - h) == rec_c - h_cent (b_dec cancels) --
    err2 = (rec_c - h_cent) ** 2                                # (bb, I*D)
    # Per-instance mean-over-d_in selector rebuilt in-kernel (no DMA); avoid
    # integer division: row k belongs to instance j iff j*d_in <= k < (j+1)*d_in.
    k_idx = jax.lax.broadcasted_iota(jnp.int32, (d_in_f, n_i), 0)
    j_idx = jax.lax.broadcasted_iota(jnp.int32, (d_in_f, n_i), 1)
    lo = j_idx * d_in
    sel_in = ((k_idx >= lo) & (k_idx < lo + d_in)).astype(f32) * (1.0 / d_in)
    l_rec = jnp.dot(err2, sel_in, precision=hp, preferred_element_type=f32)

    # ---- single lane-dense (>=128 wide) store of everything ------------------
    pieces = [acts, h_rec, l_rec, l_sp]
    pad = out_ref.shape[1] - (d_sae_f + d_in_f + 2 * n_i)
    if pad:
        pieces.append(jnp.zeros((bb, pad), f32))
    out_ref[...] = jnp.concatenate(pieces, axis=1)


def pack_sae_params(W_enc, W_dec, b_enc, b_dec):
    """Block-diagonal repack of the tiny per-instance SAE params.

    Hoisted out of the per-forward hot path: call once per parameter update
    and reuse the result for every forward pass.  The per-instance L1 selector
    is appended as extra decoder columns so the kernel gets L_sparsity from
    the same MXU matmul as the reconstruction.
    """
    n_inst, d_in, d_sae = W_enc.shape
    d_in_f, d_sae_f = n_inst * d_in, n_inst * d_sae
    f32 = jnp.float32
    eye = jnp.eye(n_inst, dtype=f32)
    w_enc_bd = jnp.einsum("ids,ij->idjs", W_enc.astype(f32), eye).reshape(d_in_f, d_sae_f)
    w_dec_bd = jnp.einsum("isd,ij->isjd", W_dec.astype(f32), eye).reshape(d_sae_f, d_in_f)
    sel_sae = jnp.repeat(eye, d_sae, axis=0)                       # (I*S, I)
    w_dec_sp = jnp.concatenate([w_dec_bd, sel_sae], axis=1)        # (I*S, I*D + I)
    return {
        "w_enc_bd": w_enc_bd,
        "w_dec_sp": w_dec_sp,
        "b_enc": b_enc.reshape(1, d_sae_f).astype(f32),
        "b_dec": b_dec.reshape(1, d_in_f).astype(f32),
    }


def toy_sae_forward_packed(h, params, l1_coeff=0.2, block_batch=None):
    """Forward pass with pre-packed params. Returns (loss_dict, loss, acts, h_rec)."""
    batch, n_inst, d_in = h.shape
    d_in_f = n_inst * d_in
    d_sae_f = params["w_enc_bd"].shape[1]
    d_sae = d_sae_f // n_inst
    f32 = jnp.float32
    out_width = _round_up(d_sae_f + d_in_f + 2 * n_inst, 128)      # lane-dense output

    # Fixed batch tile (multiple of 8). >=4 grid steps when possible so the
    # pipeline hides the h DMA and v7x's two TCs both get blocks; bb is capped
    # so the double-buffered per-step VMEM stays tiny on v7x's 64 MiB.
    if block_batch is None:
        block_batch = 256 if batch >= 1024 else max(8, _round_up(pl.cdiv(batch, 4), 8))
    bb = block_batch
    batch_p = _round_up(batch, bb)

    h_flat = h.reshape(batch, d_in_f).astype(f32)                  # free reshape, no transpose
    if batch_p != batch:
        # Padded rows are sliced off below, so they never reach the loss mean.
        h_flat = jnp.concatenate(
            [h_flat, jnp.zeros((batch_p - batch, d_in_f), f32)], axis=0)

    grid_spec = pltpu.PrefetchScalarGridSpec(
        num_scalar_prefetch=0,
        grid=(batch_p // bb,),
        in_specs=[
            pl.BlockSpec((bb, d_in_f), lambda b: (b, 0)),                  # h (streamed)
            pl.BlockSpec((d_in_f, d_sae_f), lambda b: (0, 0)),             # W_enc (block-diag)
            pl.BlockSpec((d_sae_f, d_in_f + n_inst), lambda b: (0, 0)),    # [W_dec | L1 sel]
            pl.BlockSpec((1, d_sae_f), lambda b: (0, 0)),                  # b_enc
            pl.BlockSpec((1, d_in_f), lambda b: (0, 0)),                   # b_dec
        ],
        out_specs=pl.BlockSpec((bb, out_width), lambda b: (b, 0)),
    )

    packed_out = pl.pallas_call(
        _sae_fwd_kernel,
        out_shape=jax.ShapeDtypeStruct((batch_p, out_width), f32),
        grid_spec=grid_spec,
        compiler_params=pltpu.CompilerParams(dimension_semantics=("parallel",)),
    )(h_flat, params["w_enc_bd"], params["w_dec_sp"], params["b_enc"], params["b_dec"])

    packed_out = packed_out[:batch]
    acts = packed_out[:, :d_sae_f].reshape(batch, n_inst, d_sae)
    h_rec = packed_out[:, d_sae_f:d_sae_f + d_in_f].reshape(batch, n_inst, d_in)
    L_rec = packed_out[:, d_sae_f + d_in_f:d_sae_f + d_in_f + n_inst]
    L_sp = packed_out[:, d_sae_f + d_in_f + n_inst:d_sae_f + d_in_f + 2 * n_inst]

    loss_dict = {"L_reconstruction": L_rec, "L_sparsity": L_sp}
    loss = jnp.sum(jnp.mean(L_rec + l1_coeff * L_sp, axis=0))
    return loss_dict, loss, acts, h_rec


def toy_sae_forward(h, W_enc, W_dec, b_enc, b_dec, l1_coeff=0.2):
    """Convenience wrapper: packs params per call (use pack_sae_params + the
    packed forward in a training loop to hoist the repack out of the hot path)."""
    return toy_sae_forward_packed(h, pack_sae_params(W_enc, W_dec, b_enc, b_dec), l1_coeff)


def _reference_forward(h, W_enc, W_dec, b_enc, b_dec, l1_coeff=0.2):
    h_cent = h - b_dec[None, :, :]
    acts = jax.nn.relu(
        jnp.einsum("bid,ids->bis", h_cent, W_enc) + b_enc[None, :, :])
    h_rec = jnp.einsum("bis,isd->bid", acts, W_dec) + b_dec[None, :, :]
    L_rec = jnp.mean((h_rec - h) ** 2, axis=-1)
    L_sp = jnp.sum(jnp.abs(acts), axis=-1)
    loss = jnp.sum(jnp.mean(L_rec + l1_coeff * L_sp, axis=0))
    return L_rec, L_sp, loss, acts, h_rec


if __name__ == "__main__":
    # ToySAEConfig(n_inst=8, d_in=2, d_sae=5); small batch of hidden activations.
    n_inst, d_in, d_sae = 8, 2, 5
    batch = 32
    l1_coeff = 0.2

    key = jax.random.PRNGKey(0)
    k_h, k_enc, k_dec = jax.random.split(key, 3)

    # Deterministic synthetic parameters (shapes from ToySAE.__init__):
    W_enc = jax.random.normal(k_enc, (n_inst, d_in, d_sae), jnp.float32) * 0.5
    W_dec_raw = jax.random.normal(k_dec, (n_inst, d_sae, d_in), jnp.float32)
    W_dec = W_dec_raw / (jnp.linalg.norm(W_dec_raw, axis=-1, keepdims=True) + 1e-8)
    b_enc = jnp.zeros((n_inst, d_sae), jnp.float32)
    b_dec = jnp.zeros((n_inst, d_in), jnp.float32)

    # Synthetic hidden activations h: (batch, inst, d_in)
    h = jax.random.normal(k_h, (batch, n_inst, d_in), jnp.float32)

    # Pack the tiny weights ONCE (hoisted out of the per-forward hot path).
    params = pack_sae_params(W_enc, W_dec, b_enc, b_dec)
    loss_dict, loss, acts, h_rec = toy_sae_forward_packed(h, params, l1_coeff=l1_coeff)
    jax.block_until_ready((loss_dict, loss, acts, h_rec))

    # Correctness check vs. plain-JAX reference
    L_rec_ref, L_sp_ref, loss_ref, acts_ref, h_rec_ref = _reference_forward(
        h, W_enc, W_dec, b_enc, b_dec, l1_coeff=l1_coeff)
    assert jnp.allclose(loss_dict["L_reconstruction"], L_rec_ref, atol=1e-4, rtol=1e-4)
    assert jnp.allclose(loss_dict["L_sparsity"], L_sp_ref, atol=1e-4, rtol=1e-4)
    assert jnp.allclose(acts, acts_ref, atol=1e-4, rtol=1e-4)
    assert jnp.allclose(h_rec, h_rec_ref, atol=1e-4, rtol=1e-4)
    assert jnp.allclose(loss, loss_ref, atol=1e-4, rtol=1e-4)

    print("KERNEL_OK")
</pallas_src>

<mosaic_0001>
module attributes {stable_mosaic.version = 11 : i64} {
  func.func @_sae_fwd_kernel(%arg0: i32, %arg1: memref<8x16xf32, #tpu.memory_space<vmem>>, %arg2: memref<16x40xf32, #tpu.memory_space<vmem>>, %arg3: memref<40x24xf32, #tpu.memory_space<vmem>>, %arg4: memref<1x40xf32, #tpu.memory_space<vmem>>, %arg5: memref<1x16xf32, #tpu.memory_space<vmem>>, %arg6: memref<8x128xf32, #tpu.memory_space<vmem>>) attributes {dimension_semantics = [#tpu.dimension_semantics<parallel>], iteration_bounds = array<i64: 4>, scalar_prefetch = 0 : i64, scratch_operands = 0 : i64, tpu.core_type = #tpu.core_type<tc>, window_params = [{transform_indices = @transform_0, window_bounds = array<i64: 8, 16>}, {pipeline_mode = #tpu.pipeline_mode<synchronous>, transform_indices = @transform_1, window_bounds = array<i64: 16, 40>}, {pipeline_mode = #tpu.pipeline_mode<synchronous>, transform_indices = @transform_2, window_bounds = array<i64: 40, 24>}, {pipeline_mode = #tpu.pipeline_mode<synchronous>, transform_indices = @transform_3, window_bounds = array<i64: 1, 40>}, {pipeline_mode = #tpu.pipeline_mode<synchronous>, transform_indices = @transform_4, window_bounds = array<i64: 1, 16>}, {transform_indices = @transform_5, window_bounds = array<i64: 8, 128>}]} {
    %c0 = arith.constant 0 : index
    %c0_0 = arith.constant 0 : index
    %0 = vector.load %arg1[%c0, %c0_0] : memref<8x16xf32, #tpu.memory_space<vmem>>, vector<8x16xf32>
    %c0_1 = arith.constant 0 : index
    %c0_2 = arith.constant 0 : index
    %1 = vector.load %arg5[%c0_1, %c0_2] : memref<1x16xf32, #tpu.memory_space<vmem>>, vector<1x16xf32>
    %2 = vector.broadcast %1 : vector<1x16xf32> to vector<8x16xf32>
    %3 = arith.subf %0, %2 : vector<8x16xf32>
    %c0_3 = arith.constant 0 : index
    %c0_4 = arith.constant 0 : index
    %4 = vector.load %arg2[%c0_3, %c0_4] : memref<16x40xf32, #tpu.memory_space<vmem>>, vector<16x40xf32>
    %cst = arith.constant dense<0.000000e+00> : vector<8x40xf32>
    %5 = tpu.matmul %3, %4, %cst {dimension_numbers = #tpu.dot_dimension_numbers<[1], [0], [0], [1], [0, 0, 1, 1], [], []>, precision = #tpu.contract_precision<fp32>} : vector<8x16xf32>, vector<16x40xf32>, vector<8x40xf32> -> vector<8x40xf32>
    %c0_5 = arith.constant 0 : index
    %c0_6 = arith.constant 0 : index
    %6 = vector.load %arg4[%c0_5, %c0_6] : memref<1x40xf32, #tpu.memory_space<vmem>>, vector<1x40xf32>
    %7 = vector.broadcast %6 : vector<1x40xf32> to vector<8x40xf32>
    %8 = arith.addf %5, %7 : vector<8x40xf32>
    %cst_7 = arith.constant 0.000000e+00 : f32
    %9 = vector.broadcast %cst_7 : f32 to vector<8x40xf32>
    %10 = arith.maximumf %8, %9 : vector<8x40xf32>
    %c0_8 = arith.constant 0 : index
    %c0_9 = arith.constant 0 : index
    %11 = vector.load %arg3[%c0_8, %c0_9] : memref<40x24xf32, #tpu.memory_space<vmem>>, vector<40x24xf32>
    %cst_10 = arith.constant dense<0.000000e+00> : vector<8x24xf32>
    %12 = tpu.matmul %10, %11, %cst_10 {dimension_numbers = #tpu.dot_dimension_numbers<[1], [0], [0], [1], [0, 0, 1, 1], [], []>, precision = #tpu.contract_precision<fp32>} : vector<8x40xf32>, vector<40x24xf32>, vector<8x24xf32> -> vector<8x24xf32>
    %13 = vector.extract_strided_slice %12 {offsets = [0, 0], sizes = [8, 16], strides = [1, 1]} : vector<8x24xf32> to vector<8x16xf32>
    %14 = vector.extract_strided_slice %12 {offsets = [0, 16], sizes = [8, 8], strides = [1, 1]} : vector<8x24xf32> to vector<8x8xf32>
    %15 = vector.broadcast %1 : vector<1x16xf32> to vector<8x16xf32>
    %16 = arith.addf %13, %15 : vector<8x16xf32>
    %17 = arith.subf %13, %3 : vector<8x16xf32>
    %18 = arith.mulf %17, %17 : vector<8x16xf32>
    %19 = tpu.iota {dimensions = array<i32: 0>} : vector<16x8xi32>
    %20 = tpu.iota {dimensions = array<i32: 1>} : vector<16x8xi32>
    %c2_i32 = arith.constant 2 : i32
    %21 = vector.broadcast %c2_i32 : i32 to vector<16x8xi32>
    %22 = arith.muli %20, %21 : vector<16x8xi32>
    %23 = arith.cmpi sge, %19, %22 : vector<16x8xi32>
    %c2_i32_11 = arith.constant 2 : i32
    %24 = vector.broadcast %c2_i32_11 : i32 to vector<16x8xi32>
    %25 = arith.addi %22, %24 : vector<16x8xi32>
    %26 = arith.cmpi slt, %19, %25 : vector<16x8xi32>
    %27 = arith.andi %23, %26 : vector<16x8xi1>
    %28 = arith.extui %27 : vector<16x8xi1> to vector<16x8xi32>
    %29 = arith.sitofp %28 : vector<16x8xi32> to vector<16x8xf32>
    %cst_12 = arith.constant 5.000000e-01 : f32
    %30 = vector.broadcast %cst_12 : f32 to vector<16x8xf32>
    %31 = arith.mulf %29, %30 : vector<16x8xf32>
    %cst_13 = arith.constant dense<0.000000e+00> : vector<8x8xf32>
    %32 = tpu.matmul %18, %31, %cst_13 {dimension_numbers = #tpu.dot_dimension_numbers<[1], [0], [0], [1], [0, 0, 1, 1], [], []>, precision = #tpu.contract_precision<fp32>} : vector<8x16xf32>, vector<16x8xf32>, vector<8x8xf32> -> vector<8x8xf32>
    %cst_14 = arith.constant 0.000000e+00 : f32
    %33 = vector.broadcast %cst_14 : f32 to vector<8x56xf32>
    %34 = tpu.concatenate %10, %16, %32, %14, %33 in 1 : vector<8x40xf32>, vector<8x16xf32>, vector<8x8xf32>, vector<8x8xf32>, vector<8x56xf32> -> vector<8x128xf32>
    %c0_15 = arith.constant 0 : index
    %c0_16 = arith.constant 0 : index
    %35 = vector.load %arg6[%c0_15, %c0_16] : memref<8x128xf32, #tpu.memory_space<vmem>>, vector<8x128xf32>
    tpu.vector_store %arg6[%c0_15, %c0_16], %34 {strides = array<i32>} : memref<8x128xf32, #tpu.memory_space<vmem>>, vector<8x128xf32>,
    return
  }
  func.func @transform_0(%arg0: i32) -> (i32, i32) {
    %c0_i32 = arith.constant 0 : i32
    %c0_i32_0 = arith.constant 0 : i32
    return %arg0, %c0_i32 : i32, i32
  }
  func.func @transform_1(%arg0: i32) -> (i32, i32) {
    %c0_i32 = arith.constant 0 : i32
    %c0_i32_0 = arith.constant 0 : i32
    %c0_i32_1 = arith.constant 0 : i32
    return %c0_i32, %c0_i32_0 : i32, i32
  }
  func.func @transform_2(%arg0: i32) -> (i32, i32) {
    %c0_i32 = arith.constant 0 : i32
    %c0_i32_0 = arith.constant 0 : i32
    %c0_i32_1 = arith.constant 0 : i32
    return %c0_i32, %c0_i32_0 : i32, i32
  }
  func.func @transform_3(%arg0: i32) -> (i32, i32) {
    %c0_i32 = arith.constant 0 : i32
    %c0_i32_0 = arith.constant 0 : i32
    %c0_i32_1 = arith.constant 0 : i32
    return %c0_i32, %c0_i32_0 : i32, i32
  }
  func.func @transform_4(%arg0: i32) -> (i32, i32) {
    %c0_i32 = arith.constant 0 : i32
    %c0_i32_0 = arith.constant 0 : i32
    %c0_i32_1 = arith.constant 0 : i32
    return %c0_i32, %c0_i32_0 : i32, i32
  }
  func.func @transform_5(%arg0: i32) -> (i32, i32) {
    %c0_i32 = arith.constant 0 : i32
    %c0_i32_0 = arith.constant 0 : i32
    return %arg0, %c0_i32 : i32, i32
  }
}

</mosaic_0001>

<llo_original>
// kernel: tpu_custom_call.1
$region0: #{tpu_custom_call.1}
  #allocation0 [shape = 'u32[]', space=smem, size = 0x4, offset = 0x4, fixed_abs, tag = 'smem constant byte address 0x4 - core index']
  #allocation1 [shape = 'u32[144,128]{1,0:T(1,128)}', space=vmem, size = 0x12000, scoped, tag = 'internal scratch']
  %s0 = inlined_call_operand.vmem [shape: f32[32,16], index: 0, kind: input, shape index: {}]
  %s1 = inlined_call_operand.vmem [shape: f32[16,40], index: 1, kind: input, shape index: {}]
  %s2 = inlined_call_operand.vmem [shape: f32[40,24], index: 2, kind: input, shape index: {}]
  %s3 = inlined_call_operand.vmem [shape: f32[1,40], index: 3, kind: input, shape index: {}]
  %s4 = inlined_call_operand.vmem [shape: f32[1,16], index: 4, kind: input, shape index: {}]
  %s5 = inlined_call_operand.hbm [shape: f32[32,128], index: 5, kind: output, shape index: {}]
  %s6 = sld [smem:[#allocation0]]
  $region53: #{tpu_custom_call.1} parent=0
    _
  %s8 = ssub.s32 1, %s6
  %s9 = scalar_select 0, %s8, %s6
  $region1: #{tpu_custom_call.1} parent=0
    #allocation2 [shape = 'u8[8192]{0}', space=vmem, size = 0x2000, scoped, tag = 'output window, operand 0']
    #allocation3 [shape = 's32[2]{0}', space=sflag, size = 0x8, scoped, tag = 'scoped memory for tpu_custom_call.1']
    %10 = vsyncpa [#allocation3], 0
    %s11 = scalar_lea.sflag [#allocation3], 1
    %12 = vsyncpa %s11, 0
    loop: start=0, step=1, limit=6
    $region2: #{tpu_custom_call.1} parent=1 // loop_pre_header
      _
    $region3: #{tpu_custom_call.1} parent=1 // loop_header
      %s14 = sphi 0, %s18
      %p15 = scmp.ge.s32.totalorder %s14, 6
      %s24 = sphi 0, %s26
      %s27 = sphi 0, %s24
      %s28 = sphi 0, %s27
      %s44 = sphi 0, %s28
      %s48 = sphi 0, %s48
      %s50 = sphi 0, %s48
      %s51 = sphi 0, %s50
      %s65 = sphi 0, %s51
      %s69 = sphi 0, %s69
      %s71 = sphi 0, %s69
      %s72 = sphi 0, %s71
      %s86 = sphi 0, %s72
      %s90 = sphi 0, %s90
      %s92 = sphi 0, %s90
      %s93 = sphi 0, %s92
      %s107 = sphi 0, %s93
      %s111 = sphi 0, %s111
      %s113 = sphi 0, %s111
      %s114 = sphi 0, %s113
      %s128 = sphi 0, %s114
      %s134 = sphi 0, %s136
      %s137 = sphi 0, %s134
      %s138 = sphi 0, %s137
      %s154 = sphi 0, %s138
    $region4: #{tpu_custom_call.1} parent=1 // loop_header_branch
      %17 = sbr.rel (%p15) target = $region8
    $region5: #{tpu_custom_call.1} parent=1 // loop_body
      %s19 = ssub.s32 %s14, 1
      %s20 = ssub.s32 %s14, 2
      %s21 = sadd.s32 %s14, 1
      %s22 = ssub.s32 %s14, %s21
      %p23 = scmp.eq.s32.totalorder %s22, 0
      %s25 = sadd.s32 %s24, 1
      %s26 = scalar_select %p23, %s24, %s25
      %p29 = pneg %p23
      %p30 = scmp.eq.s32.totalorder %s14, 3
      %p31 = por %p29, %p30
      %p32 = scmp.ne.s32.totalorder %s24, %s27
      %p33 = scmp.eq.s32.totalorder %s14, 0
      %p34 = por %p32, %p33
      %p35 = scmp.ne.s32.totalorder %s24, %s27
      %p36 = scmp.eq.s32.totalorder %s19, 3
      %p37 = por %p35, %p36
      %p38 = scmp.ne.s32.totalorder %s27, %s28
      %p39 = scmp.eq.s32.totalorder %s19, 0
      %p40 = por %p38, %p39
      %p41 = scmp.ne.s32.totalorder %s27, %s28
      %p42 = scmp.eq.s32.totalorder %s20, 3
      %p43 = por %p41, %p42
      %p45 = scmp.ne.s32.totalorder %s28, %s44
      %p46 = scmp.eq.s32.totalorder %s20, 0
      %p47 = por %p45, %p46
      %s49 = sadd.s32 %s48, 1
      %p52 = scmp.eq.s32.totalorder %s14, 3
      %p53 = scmp.ne.s32.totalorder %s48, %s50
      %p54 = scmp.eq.s32.totalorder %s14, 0
      %p55 = por %p53, %p54
      %p56 = scmp.ne.s32.totalorder %s48, %s50
      %p57 = scmp.eq.s32.totalorder %s19, 3
      %p58 = por %p56, %p57
      %p59 = scmp.ne.s32.totalorder %s50, %s51
      %p60 = scmp.eq.s32.totalorder %s19, 0
      %p61 = por %p59, %p60
      %p62 = scmp.ne.s32.totalorder %s50, %s51
      %p63 = scmp.eq.s32.totalorder %s20, 3
      %p64 = por %p62, %p63
      %p66 = scmp.ne.s32.totalorder %s51, %s65
      %p67 = scmp.eq.s32.totalorder %s20, 0
      %p68 = por %p66, %p67
      %s70 = sadd.s32 %s69, 1
      %p73 = scmp.eq.s32.totalorder %s14, 3
      %p74 = scmp.ne.s32.totalorder %s69, %s71
      %p75 = scmp.eq.s32.totalorder %s14, 0
      %p76 = por %p74, %p75
      %p77 = scmp.ne.s32.totalorder %s69, %s71
      %p78 = scmp.eq.s32.totalorder %s19, 3
      %p79 = por %p77, %p78
      %p80 = scmp.ne.s32.totalorder %s71, %s72
      %p81 = scmp.eq.s32.totalorder %s19, 0
      %p82 = por %p80, %p81
      %p83 = scmp.ne.s32.totalorder %s71, %s72
      %p84 = scmp.eq.s32.totalorder %s20, 3
      %p85 = por %p83, %p84
      %p87 = scmp.ne.s32.totalorder %s72, %s86
      %p88 = scmp.eq.s32.totalorder %s20, 0
      %p89 = por %p87, %p88
      %s91 = sadd.s32 %s90, 1
      %p94 = scmp.eq.s32.totalorder %s14, 3
      %p95 = scmp.ne.s32.totalorder %s90, %s92
      %p96 = scmp.eq.s32.totalorder %s14, 0
      %p97 = por %p95, %p96
      %p98 = scmp.ne.s32.totalorder %s90, %s92
      %p99 = scmp.eq.s32.totalorder %s19, 3
      %p100 = por %p98, %p99
      %p101 = scmp.ne.s32.totalorder %s92, %s93
      %p102 = scmp.eq.s32.totalorder %s19, 0
      %p103 = por %p101, %p102
      %p104 = scmp.ne.s32.totalorder %s92, %s93
      %p105 = scmp.eq.s32.totalorder %s20, 3
      %p106 = por %p104, %p105
      %p108 = scmp.ne.s32.totalorder %s93, %s107
      %p109 = scmp.eq.s32.totalorder %s20, 0
      %p110 = por %p108, %p109
      %s112 = sadd.s32 %s111, 1
      %p115 = scmp.eq.s32.totalorder %s14, 3
      %p116 = scmp.ne.s32.totalorder %s111, %s113
      %p117 = scmp.eq.s32.totalorder %s14, 0
      %p118 = por %p116, %p117
      %p119 = scmp.ne.s32.totalorder %s111, %s113
      %p120 = scmp.eq.s32.totalorder %s19, 3
      %p121 = por %p119, %p120
      %p122 = scmp.ne.s32.totalorder %s113, %s114
      %p123 = scmp.eq.s32.totalorder %s19, 0
      %p124 = por %p122, %p123
      %p125 = scmp.ne.s32.totalorder %s113, %s114
      %p126 = scmp.eq.s32.totalorder %s20, 3
      %p127 = por %p125, %p126
      %p129 = scmp.ne.s32.totalorder %s114, %s128
      %p130 = scmp.eq.s32.totalorder %s20, 0
      %p131 = por %p129, %p130
      %s132 = ssub.s32 %s14, %s21
      %p133 = scmp.eq.s32.totalorder %s132, 0
      %s135 = sadd.s32 %s134, 1
      %s136 = scalar_select %p133, %s134, %s135
      %p139 = pneg %p133
      %p140 = scmp.eq.s32.totalorder %s14, 3
      %p141 = por %p139, %p140
      %p142 = scmp.ne.s32.totalorder %s134, %s137
      %p143 = scmp.eq.s32.totalorder %s14, 0
      %p144 = por %p142, %p143
      %p145 = scmp.ne.s32.totalorder %s134, %s137
      %p146 = scmp.eq.s32.totalorder %s19, 3
      %p147 = por %p145, %p146
      %p148 = scmp.ne.s32.totalorder %s137, %s138
      %p149 = scmp.eq.s32.totalorder %s19, 0
      %p150 = por %p148, %p149
      %p151 = scmp.ne.s32.totalorder %s137, %s138
      %p152 = scmp.eq.s32.totalorder %s20, 3
      %p153 = por %p151, %p152
      %p155 = scmp.ne.s32.totalorder %s138, %s154
      %p156 = scmp.eq.s32.totalorder %s20, 0
      %p157 = por %p155, %p156
      %p158 = scmp.le.s32.totalorder 1, %s14
      %p159 = scmp.lt.s32.totalorder %s14, 5
      %p160 = pnand %p158, %p159
      %p161 = pneg %p160
      // Predicated region
      $region9: #{tpu_custom_call.1} parent=5 // pred_check
        _
      $region10: #{tpu_custom_call.1} parent=5 // pred_check_branch
        %163 = sbr.rel (%p160) target = $region12
      $region11: #{tpu_custom_call.1} parent=5 // pred_region
        %s164 = ssub.s32 %s14, 1
        // Predicated region
        $region13: #{tpu_custom_call.1} parent=11 // pred_check
          %p165 = pneg %p61
        $region14: #{tpu_custom_call.1} parent=11 // pred_check_branch
          %167 = sbr.rel (%p165) target = $region16
        $region15: #{tpu_custom_call.1} parent=11 // pred_region
          _
        $region16: #{tpu_custom_call.1} parent=11 // pred_fallthru
          _
        // Predicated region
        $region17: #{tpu_custom_call.1} parent=11 // pred_check
          %p168 = pneg %p82
        $region18: #{tpu_custom_call.1} parent=11 // pred_check_branch
          %170 = sbr.rel (%p168) target = $region20
        $region19: #{tpu_custom_call.1} parent=11 // pred_region
          _
        $region20: #{tpu_custom_call.1} parent=11 // pred_fallthru
          _
        // Predicated region
        $region21: #{tpu_custom_call.1} parent=11 // pred_check
          %p171 = pneg %p103
        $region22: #{tpu_custom_call.1} parent=11 // pred_check_branch
          %173 = sbr.rel (%p171) target = $region24
        $region23: #{tpu_custom_call.1} parent=11 // pred_region
          _
        $region24: #{tpu_custom_call.1} parent=11 // pred_fallthru
          _
        // Predicated region
        $region25: #{tpu_custom_call.1} parent=11 // pred_check
          %p174 = pneg %p124
        $region26: #{tpu_custom_call.1} parent=11 // pred_check_branch
          %176 = sbr.rel (%p174) target = $region28
        $region27: #{tpu_custom_call.1} parent=11 // pred_region
          _
        $region28: #{tpu_custom_call.1} parent=11 // pred_fallthru
          _
      $region12: #{tpu_custom_call.1} parent=5 // pred_fallthru
        _
      %p177 = scmp.lt.s32.totalorder %s14, 4
      // Predicated region
      $region29: #{tpu_custom_call.1} parent=5 // pred_check
        %p178 = pneg %p177
      $region30: #{tpu_custom_call.1} parent=5 // pred_check_branch
        %180 = sbr.rel (%p178) target = $region32
      $region31: #{tpu_custom_call.1} parent=5 // pred_region
        // Predicated region
        $region33: #{tpu_custom_call.1} parent=31 // pred_check
          %p181 = pneg %p34
        $region34: #{tpu_custom_call.1} parent=31 // pred_check_branch
          %183 = sbr.rel (%p181) target = $region36
        $region35: #{tpu_custom_call.1} parent=31 // pred_region
          %p184 = scmp.lt.s32.totalorder %s14, 3
          %s185 = scalar_select %p184, %s14, 3
          %s186 = smul.addr %s185, 8
          %s187 = scalar_lea.vmem %s0, %s186
        $region36: #{tpu_custom_call.1} parent=31 // pred_fallthru
          _
      $region32: #{tpu_custom_call.1} parent=5 // pred_fallthru
        _
      %p188 = scmp.le.s32.totalorder 1, %s14
      %p189 = scmp.lt.s32.totalorder %s14, 5
      %p190 = pnand %p188, %p189
      %p191 = pneg %p190
      // Predicated region
      $region37: #{tpu_custom_call.1} parent=5 // pred_check
        _
      $region38: #{tpu_custom_call.1} parent=5 // pred_check_branch
        %193 = sbr.rel (%p190) target = $region40
      $region39: #{tpu_custom_call.1} parent=5 // pred_region
        %s194 = ssub.s32 %s14, 1
        %p195 = scmp.lt.s32.totalorder %s19, 3
        %s196 = scalar_select %p195, %s19, 3
        %s197 = smul.addr %s196, 8
        %s198 = scalar_lea.vmem %s0, %s197
        %p199 = pneg %p40
        %p200 = pneg %p37
        %p201 = pneg %p61
        %p202 = pneg %p58
        %p203 = pneg %p82
        %p204 = pneg %p79
        %p205 = pneg %p103
        %p206 = pneg %p100
        %p207 = pneg %p124
        %p208 = pneg %p121
        %p209 = pneg %p150
        %p210 = pneg %p147
        %s211 = sand.u32 %s137, 1
        %s212 = scalar_lea.sflag [#allocation3], %s211
        %s213 = sand.u32 %s137, 1
        %s214 = smul.addr %s213, 8
        %s215 = scalar_lea.vmem [#allocation2], %s214
        %p216 = scmp.lt.s32.totalorder %s19, 3
        %s217 = scalar_select %p216, %s19, 3
        %s218 = smul.addr %s217, 8
        %s219 = scalar_lea.vmem %s0, %s218
        %v220 = vld [vmem:[%s219] sm:$0xff]
        %v221 = vld [vmem:[%s4] sm:$0x1]
        %v223 = vlaneseq
        %v224 = vshrl.u32 %v223, 7
        %v225 = vsub.s32 0, %v224
        %v226 = vrot.slane %v221, %v225
        %v228 = vsub.f32 %v220, %v226
        %v229 = vld [vmem:[%s1] sm:$0xff]
        %v230 = vld [vmem:[%s1 + $0x8] sm:$0xff]
        %v231 = vld [vmem:[%s3] sm:$0x1]
        %v233 = vlaneseq
        %v234 = vshrl.u32 %v233, 7
        %v235 = vsub.s32 0, %v234
        %v236 = vrot.slane %v231, %v235
        %vm238 = vcmask 130048
        %v240 = vsel %vm238, %v228, 0
        %242 = vmatprep.subr.mxu0 0.0
        %v243 = vand.u32 %v229, 4294901760
        %244 = vmatpush1.msra.mxu0 %v243
        %245 = vmatprep.subr.mxu0 0.0
        %v246 = vand.u32 %v230, 4294901760
        %247 = vmatpush1.msra.mxu0 %v246
        %248 = vmatprep.subr.mxu0 0.0
        %249 = vmatpush1.msra.mxu0 0.0
        %250 = vmatprep.subr.mxu0 0.0
        %251 = vmatpush1.msra.mxu0 0.0
        %252 = vmatprep.subr.mxu0 0.0
        %253 = vmatpush1.msra.mxu0 0.0
        %254 = vmatprep.subr.mxu0 0.0
        %255 = vmatpush1.msra.mxu0 0.0
        %256 = vmatprep.subr.mxu0 0.0
        %257 = vmatpush1.msra.mxu0 0.0
        %258 = vmatprep.subr.mxu0 0.0
        %259 = vmatpush1.msra.mxu0 0.0
        %260 = vmatprep.subr.mxu0 0.0
        %261 = vmatpush1.msra.mxu0 0.0
        %262 = vmatprep.subr.mxu0 0.0
        %263 = vmatpush1.msra.mxu0 0.0
        %264 = vmatprep.subr.mxu0 0.0
        %265 = vmatpush1.msra.mxu0 0.0
        %266 = vmatprep.subr.mxu0 0.0
        %267 = vmatpush1.msra.mxu0 0.0
        %268 = vmatprep.subr.mxu0 0.0
        %269 = vmatpush1.msra.mxu0 0.0
        %270 = vmatprep.subr.mxu0 0.0
        %271 = vmatpush1.msra.mxu0 0.0
        %272 = vmatprep.subr.mxu0 0.0
        %273 = vmatpush1.msra.mxu0 0.0
        %274 = vmatprep.subr.mxu0 0.0
        %275 = vmatpush1.msra.mxu0 0.0
        %276 = vmatprep.subr.mxu0 0.0
        %277 = vmatpush1.msra.mxu0 0.0
        %278 = vmatprep.subr.mxu0 0.0
        %279 = vmatpush1.msra.mxu0 0.0
        %280 = vmatprep.subr.mxu0 0.0
        %281 = vmatpush1.msra.mxu0 0.0
        %282 = vmatprep.subr.mxu0 0.0
        %283 = vmatpush1.msra.mxu0 0.0
        %284 = vmatprep.subr.mxu0 0.0
        %285 = vmatpush1.msra.mxu0 0.0
        %286 = vmatprep.subr.mxu0 0.0
        %287 = vmatpush1.msra.mxu0 0.0
        %288 = vmatprep.subr.mxu0 0.0
        %289 = vmatpush1.msra.mxu0 0.0
        %290 = vmatprep.subr.mxu0 0.0
        %291 = vmatpush1.msra.mxu0 0.0
        %292 = vmatprep.subr.mxu0 0.0
        %293 = vmatpush1.msra.mxu0 0.0
        %294 = vmatprep.subr.mxu0 0.0
        %295 = vmatpush1.msra.mxu0 0.0
        %296 = vmatprep.subr.mxu0 0.0
        %297 = vmatpush1.msra.mxu0 0.0
        %298 = vmatprep.subr.mxu0 0.0
        %299 = vmatpush1.msra.mxu0 0.0
        %300 = vmatprep.subr.mxu0 0.0
        %301 = vmatpush1.msra.mxu0 0.0
        %302 = vmatprep.subr.mxu0 0.0
        %303 = vmatpush1.msra.mxu0 0.0
        %304 = vmatprep.subr.mxu0 0.0
        %305 = vmatpush1.msra.mxu0 0.0
        %306 = vmatprep.subr.mxu0 0.0
        %307 = vmatpush1.msra.mxu0 0.0
        %308 = vmatprep.mubr.f32.mxu0 0.0
        %v309 = vand.u32 %v240, 4294901760
        %v310 = vsub.f32 %v240, %v309
        %v311 = vand.u32 %v310, 4294901760
        %v312 = vsub.f32 %v310, %v311
        %v313 = vand.u32 %v312, 4294901760
        %314 = vmatmul.mubr.f32.gmra.mrb[0].mxu0 %v313
        %v315 = vpop.f32.mrb[0].mxu0
        %v316 = vadd.f32 %v236, %v315
        %v317 = vpop.f32.mrb[0].mxu0
        %318 = vdwg.mxu0
        %319 = vmatprep.subr.mxu0 0.0
        %v320 = vand.u32 %v229, 4294901760
        %v321 = vsub.f32 %v229, %v320
        %v322 = vand.u32 %v321, 4294901760
        %v323 = vsub.f32 %v321, %v322
        %v324 = vand.u32 %v323, 4294901760
        %325 = vmatpush1.msra.mxu0 %v324
        %326 = vmatprep.subr.mxu0 0.0
        %v327 = vand.u32 %v230, 4294901760
        %v328 = vsub.f32 %v230, %v327
        %v329 = vand.u32 %v328, 4294901760
        %v330 = vsub.f32 %v328, %v329
        %v331 = vand.u32 %v330, 4294901760
        %332 = vmatpush1.msra.mxu0 %v331
        %333 = vmatprep.subr.mxu0 0.0
        %334 = vmatpush1.msra.mxu0 0.0
        %335 = vmatprep.subr.mxu0 0.0
        %336 = vmatpush1.msra.mxu0 0.0
        %337 = vmatprep.subr.mxu0 0.0
        %338 = vmatpush1.msra.mxu0 0.0
        %339 = vmatprep.subr.mxu0 0.0
        %340 = vmatpush1.msra.mxu0 0.0
        %341 = vmatprep.subr.mxu0 0.0
        %342 = vmatpush1.msra.mxu0 0.0
        %343 = vmatprep.subr.mxu0 0.0
        %344 = vmatpush1.msra.mxu0 0.0
        %345 = vmatprep.subr.mxu0 0.0
        %346 = vmatpush1.msra.mxu0 0.0
        %347 = vmatprep.subr.mxu0 0.0
        %348 = vmatpush1.msra.mxu0 0.0
        %349 = vmatprep.subr.mxu0 0.0
        %350 = vmatpush1.msra.mxu0 0.0
        %351 = vmatprep.subr.mxu0 0.0
        %352 = vmatpush1.msra.mxu0 0.0
        %353 = vmatprep.subr.mxu0 0.0
        %354 = vmatpush1.msra.mxu0 0.0
        %355 = vmatprep.subr.mxu0 0.0
        %356 = vmatpush1.msra.mxu0 0.0
        %357 = vmatprep.subr.mxu0 0.0
        %358 = vmatpush1.msra.mxu0 0.0
        %359 = vmatprep.subr.mxu0 0.0
        %360 = vmatpush1.msra.mxu0 0.0
        %361 = vmatprep.subr.mxu0 0.0
        %362 = vmatpush1.msra.mxu0 0.0
        %363 = vmatprep.subr.mxu0 0.0
        %364 = vmatpush1.msra.mxu0 0.0
        %365 = vmatprep.subr.mxu0 0.0
        %366 = vmatpush1.msra.mxu0 0.0
        %367 = vmatprep.subr.mxu0 0.0
        %368 = vmatpush1.msra.mxu0 0.0
        %369 = vmatprep.subr.mxu0 0.0
        %370 = vmatpush1.msra.mxu0 0.0
        %371 = vmatprep.subr.mxu0 0.0
        %372 = vmatpush1.msra.mxu0 0.0
        %373 = vmatprep.subr.mxu0 0.0
        %374 = vmatpush1.msra.mxu0 0.0
        %375 = vmatprep.subr.mxu0 0.0
        %376 = vmatpush1.msra.mxu0 0.0
        %377 = vmatprep.subr.mxu0 0.0
        %378 = vmatpush1.msra.mxu0 0.0
        %379 = vmatprep.subr.mxu0 0.0
        %380 = vmatpush1.msra.mxu0 0.0
        %381 = vmatprep.subr.mxu0 0.0
        %382 = vmatpush1.msra.mxu0 0.0
        %383 = vmatprep.subr.mxu0 0.0
        %384 = vmatpush1.msra.mxu0 0.0
        %385 = vmatprep.subr.mxu0 0.0
        %386 = vmatpush1.msra.mxu0 0.0
        %387 = vmatprep.subr.mxu0 0.0
        %388 = vmatpush1.msra.mxu0 0.0
        %389 = vmatprep.subr.mxu0 0.0
        %390 = vmatpush1.msra.mxu0 0.0
        %391 = vmatprep.subr.mxu0 0.0
        %392 = vmatpush1.msra.mxu0 0.0
        %393 = vmatprep.mubr.f32.mxu0 0.0
        %v394 = vand.u32 %v240, 4294901760
        %395 = vmatmul.mubr.f32.gmra.mrb[0].mxu0 %v394
        %v396 = vpop.f32.mrb[0].mxu0
        %v397 = vadd.f32 %v316, %v396
        %v398 = vpop.f32.mrb[0].mxu0
        %399 = vdwg.mxu0
        %400 = vmatprep.subr.mxu0 0.0
        %v401 = vand.u32 %v229, 4294901760
        %v402 = vsub.f32 %v229, %v401
        %403 = vmatpush1.msra.mxu0 %v402
        %404 = vmatprep.subr.mxu0 0.0
        %v405 = vand.u32 %v230, 4294901760
        %v406 = vsub.f32 %v230, %v405
        %407 = vmatpush1.msra.mxu0 %v406
        %408 = vmatprep.subr.mxu0 0.0
        %409 = vmatpush1.msra.mxu0 0.0
        %410 = vmatprep.subr.mxu0 0.0
        %411 = vmatpush1.msra.mxu0 0.0
        %412 = vmatprep.subr.mxu0 0.0
        %413 = vmatpush1.msra.mxu0 0.0
        %414 = vmatprep.subr.mxu0 0.0
        %415 = vmatpush1.msra.mxu0 0.0
        %416 = vmatprep.subr.mxu0 0.0
        %417 = vmatpush1.msra.mxu0 0.0
        %418 = vmatprep.subr.mxu0 0.0
        %419 = vmatpush1.msra.mxu0 0.0
        %420 = vmatprep.subr.mxu0 0.0
        %421 = vmatpush1.msra.mxu0 0.0
        %422 = vmatprep.subr.mxu0 0.0
        %423 = vmatpush1.msra.mxu0 0.0
        %424 = vmatprep.subr.mxu0 0.0
        %425 = vmatpush1.msra.mxu0 0.0
        %426 = vmatprep.subr.mxu0 0.0
        %427 = vmatpush1.msra.mxu0 0.0
        %428 = vmatprep.subr.mxu0 0.0
        %429 = vmatpush1.msra.mxu0 0.0
        %430 = vmatprep.subr.mxu0 0.0
        %431 = vmatpush1.msra.mxu0 0.0
        %432 = vmatprep.subr.mxu0 0.0
        %433 = vmatpush1.msra.mxu0 0.0
        %434 = vmatprep.subr.mxu0 0.0
        %435 = vmatpush1.msra.mxu0 0.0
        %436 = vmatprep.subr.mxu0 0.0
        %437 = vmatpush1.msra.mxu0 0.0
        %438 = vmatprep.subr.mxu0 0.0
        %439 = vmatpush1.msra.mxu0 0.0
        %440 = vmatprep.subr.mxu0 0.0
        %441 = vmatpush1.msra.mxu0 0.0
        %442 = vmatprep.subr.mxu0 0.0
        %443 = vmatpush1.msra.mxu0 0.0
        %444 = vmatprep.subr.mxu0 0.0
        %445 = vmatpush1.msra.mxu0 0.0
        %446 = vmatprep.subr.mxu0 0.0
        %447 = vmatpush1.msra.mxu0 0.0
        %448 = vmatprep.subr.mxu0 0.0
        %449 = vmatpush1.msra.mxu0 0.0
        %450 = vmatprep.subr.mxu0 0.0
        %451 = vmatpush1.msra.mxu0 0.0
        %452 = vmatprep.subr.mxu0 0.0
        %453 = vmatpush1.msra.mxu0 0.0
        %454 = vmatprep.subr.mxu0 0.0
        %455 = vmatpush1.msra.mxu0 0.0
        %456 = vmatprep.subr.mxu0 0.0
        %457 = vmatpush1.msra.mxu0 0.0
        %458 = vmatprep.subr.mxu0 0.0
        %459 = vmatpush1.msra.mxu0 0.0
        %460 = vmatprep.subr.mxu0 0.0
        %461 = vmatpush1.msra.mxu0 0.0
        %462 = vmatprep.subr.mxu0 0.0
        %463 = vmatpush1.msra.mxu0 0.0
        %464 = vmatprep.subr.mxu0 0.0
        %465 = vmatpush1.msra.mxu0 0.0
        %466 = vmatprep.subr.mxu0 0.0
        %467 = vmatpush1.msra.mxu0 0.0
        %468 = vmatprep.mubr.f32.mxu0 0.0
        %v469 = vand.u32 %v240, 4294901760
        %v470 = vsub.f32 %v240, %v469
        %471 = vmatmul.mubr.f32.gmra.mrb[0].mxu0 %v470
        %v472 = vpop.f32.mrb[0].mxu0
        %v473 = vadd.f32 %v397, %v472
        %v474 = vpop.f32.mrb[0].mxu0
        %475 = vdwg.mxu0
        %476 = vmatprep.subr.mxu0 0.0
        %v477 = vand.u32 %v229, 4294901760
        %478 = vmatpush1.msra.mxu0 %v477
        %479 = vmatprep.subr.mxu0 0.0
        %v480 = vand.u32 %v230, 4294901760
        %481 = vmatpush1.msra.mxu0 %v480
        %482 = vmatprep.subr.mxu0 0.0
        %483 = vmatpush1.msra.mxu0 0.0
        %484 = vmatprep.subr.mxu0 0.0
        %485 = vmatpush1.msra.mxu0 0.0
        %486 = vmatprep.subr.mxu0 0.0
        %487 = vmatpush1.msra.mxu0 0.0
        %488 = vmatprep.subr.mxu0 0.0
        %489 = vmatpush1.msra.mxu0 0.0
        %490 = vmatprep.subr.mxu0 0.0
        %491 = vmatpush1.msra.mxu0 0.0
        %492 = vmatprep.subr.mxu0 0.0
        %493 = vmatpush1.msra.mxu0 0.0
        %494 = vmatprep.subr.mxu0 0.0
        %495 = vmatpush1.msra.mxu0 0.0
        %496 = vmatprep.subr.mxu0 0.0
        %497 = vmatpush1.msra.mxu0 0.0
        %498 = vmatprep.subr.mxu0 0.0
        %499 = vmatpush1.msra.mxu0 0.0
        %500 = vmatprep.subr.mxu0 0.0
        %501 = vmatpush1.msra.mxu0 0.0
        %502 = vmatprep.subr.mxu0 0.0
        %503 = vmatpush1.msra.mxu0 0.0
        %504 = vmatprep.subr.mxu0 0.0
        %505 = vmatpush1.msra.mxu0 0.0
        %506 = vmatprep.subr.mxu0 0.0
        %507 = vmatpush1.msra.mxu0 0.0
        %508 = vmatprep.subr.mxu0 0.0
        %509 = vmatpush1.msra.mxu0 0.0
        %510 = vmatprep.subr.mxu0 0.0
        %511 = vmatpush1.msra.mxu0 0.0
        %512 = vmatprep.subr.mxu0 0.0
        %513 = vmatpush1.msra.mxu0 0.0
        %514 = vmatprep.subr.mxu0 0.0
        %515 = vmatpush1.msra.mxu0 0.0
        %516 = vmatprep.subr.mxu0 0.0
        %517 = vmatpush1.msra.mxu0 0.0
        %518 = vmatprep.subr.mxu0 0.0
        %519 = vmatpush1.msra.mxu0 0.0
        %520 = vmatprep.subr.mxu0 0.0
        %521 = vmatpush1.msra.mxu0 0.0
        %522 = vmatprep.subr.mxu0 0.0
        %523 = vmatpush1.msra.mxu0 0.0
        %524 = vmatprep.subr.mxu0 0.0
        %525 = vmatpush1.msra.mxu0 0.0
        %526 = vmatprep.subr.mxu0 0.0
        %527 = vmatpush1.msra.mxu0 0.0
        %528 = vmatprep.subr.mxu0 0.0
        %529 = vmatpush1.msra.mxu0 0.0
        %530 = vmatprep.subr.mxu0 0.0
        %531 = vmatpush1.msra.mxu0 0.0
        %532 = vmatprep.subr.mxu0 0.0
        %533 = vmatpush1.msra.mxu0 0.0
        %534 = vmatprep.subr.mxu0 0.0
        %535 = vmatpush1.msra.mxu0 0.0
        %536 = vmatprep.subr.mxu0 0.0
        %537 = vmatpush1.msra.mxu0 0.0
        %538 = vmatprep.subr.mxu0 0.0
        %539 = vmatpush1.msra.mxu0 0.0
        %540 = vmatprep.subr.mxu0 0.0
        %541 = vmatpush1.msra.mxu0 0.0
        %542 = vmatprep.mubr.f32.mxu0 0.0
        %v543 = vand.u32 %v240, 4294901760
        %v544 = vsub.f32 %v240, %v543
        %v545 = vand.u32 %v544, 4294901760
        %546 = vmatmul.mubr.f32.gmra.mrb[0].mxu0 %v545
        %v547 = vpop.f32.mrb[0].mxu0
        %v548 = vadd.f32 %v473, %v547
        %v549 = vpop.f32.mrb[0].mxu0
        %550 = vdwg.mxu0
        %551 = vmatprep.subr.mxu0 0.0
        %v552 = vand.u32 %v229, 4294901760
        %v553 = vsub.f32 %v229, %v552
        %v554 = vand.u32 %v553, 4294901760
        %555 = vmatpush1.msra.mxu0 %v554
        %556 = vmatprep.subr.mxu0 0.0
        %v557 = vand.u32 %v230, 4294901760
        %v558 = vsub.f32 %v230, %v557
        %v559 = vand.u32 %v558, 4294901760
        %560 = vmatpush1.msra.mxu0 %v559
        %561 = vmatprep.subr.mxu0 0.0
        %562 = vmatpush1.msra.mxu0 0.0
        %563 = vmatprep.subr.mxu0 0.0
        %564 = vmatpush1.msra.mxu0 0.0
        %565 = vmatprep.subr.mxu0 0.0
        %566 = vmatpush1.msra.mxu0 0.0
        %567 = vmatprep.subr.mxu0 0.0
        %568 = vmatpush1.msra.mxu0 0.0
        %569 = vmatprep.subr.mxu0 0.0
        %570 = vmatpush1.msra.mxu0 0.0
        %571 = vmatprep.subr.mxu0 0.0
        %572 = vmatpush1.msra.mxu0 0.0
        %573 = vmatprep.subr.mxu0 0.0
        %574 = vmatpush1.msra.mxu0 0.0
        %575 = vmatprep.subr.mxu0 0.0
        %576 = vmatpush1.msra.mxu0 0.0
        %577 = vmatprep.subr.mxu0 0.0
        %578 = vmatpush1.msra.mxu0 0.0
        %579 = vmatprep.subr.mxu0 0.0
        %580 = vmatpush1.msra.mxu0 0.0
        %581 = vmatprep.subr.mxu0 0.0
        %582 = vmatpush1.msra.mxu0 0.0
        %583 = vmatprep.subr.mxu0 0.0
        %584 = vmatpush1.msra.mxu0 0.0
        %585 = vmatprep.subr.mxu0 0.0
        %586 = vmatpush1.msra.mxu0 0.0
        %587 = vmatprep.subr.mxu0 0.0
        %588 = vmatpush1.msra.mxu0 0.0
        %589 = vmatprep.subr.mxu0 0.0
        %590 = vmatpush1.msra.mxu0 0.0
        %591 = vmatprep.subr.mxu0 0.0
        %592 = vmatpush1.msra.mxu0 0.0
        %593 = vmatprep.subr.mxu0 0.0
        %594 = vmatpush1.msra.mxu0 0.0
        %595 = vmatprep.subr.mxu0 0.0
        %596 = vmatpush1.msra.mxu0 0.0
        %597 = vmatprep.subr.mxu0 0.0
        %598 = vmatpush1.msra.mxu0 0.0
        %599 = vmatprep.subr.mxu0 0.0
        %600 = vmatpush1.msra.mxu0 0.0
        %601 = vmatprep.subr.mxu0 0.0
        %602 = vmatpush1.msra.mxu0 0.0
        %603 = vmatprep.subr.mxu0 0.0
        %604 = vmatpush1.msra.mxu0 0.0
        %605 = vmatprep.subr.mxu0 0.0
        %606 = vmatpush1.msra.mxu0 0.0
        %607 = vmatprep.subr.mxu0 0.0
        %608 = vmatpush1.msra.mxu0 0.0
        %609 = vmatprep.subr.mxu0 0.0
        %610 = vmatpush1.msra.mxu0 0.0
        %611 = vmatprep.subr.mxu0 0.0
        %612 = vmatpush1.msra.mxu0 0.0
        %613 = vmatprep.subr.mxu0 0.0
        %614 = vmatpush1.msra.mxu0 0.0
        %615 = vmatprep.subr.mxu0 0.0
        %616 = vmatpush1.msra.mxu0 0.0
        %617 = vmatprep.subr.mxu0 0.0
        %618 = vmatpush1.msra.mxu0 0.0
        %619 = vmatprep.subr.mxu0 0.0
        %620 = vmatpush1.msra.mxu0 0.0
        %621 = vmatprep.mubr.f32.mxu0 0.0
        %v622 = vand.u32 %v240, 4294901760
        %623 = vmatmul.mubr.f32.gmra.mrb[0].mxu0 %v622
        %v624 = vpop.f32.mrb[0].mxu0
        %v625 = vadd.f32 %v548, %v624
        %v626 = vpop.f32.mrb[0].mxu0
        %627 = vdwg.mxu0
        %628 = vmatprep.subr.mxu0 0.0
        %v629 = vand.u32 %v229, 4294901760
        %630 = vmatpush1.msra.mxu0 %v629
        %631 = vmatprep.subr.mxu0 0.0
        %v632 = vand.u32 %v230, 4294901760
        %633 = vmatpush1.msra.mxu0 %v632
        %634 = vmatprep.subr.mxu0 0.0
        %635 = vmatpush1.msra.mxu0 0.0
        %636 = vmatprep.subr.mxu0 0.0
        %637 = vmatpush1.msra.mxu0 0.0
        %638 = vmatprep.subr.mxu0 0.0
        %639 = vmatpush1.msra.mxu0 0.0
        %640 = vmatprep.subr.mxu0 0.0
        %641 = vmatpush1.msra.mxu0 0.0
        %642 = vmatprep.subr.mxu0 0.0
        %643 = vmatpush1.msra.mxu0 0.0
        %644 = vmatprep.subr.mxu0 0.0
        %645 = vmatpush1.msra.mxu0 0.0
        %646 = vmatprep.subr.mxu0 0.0
        %647 = vmatpush1.msra.mxu0 0.0
        %648 = vmatprep.subr.mxu0 0.0
        %649 = vmatpush1.msra.mxu0 0.0
        %650 = vmatprep.subr.mxu0 0.0
        %651 = vmatpush1.msra.mxu0 0.0
        %652 = vmatprep.subr.mxu0 0.0
        %653 = vmatpush1.msra.mxu0 0.0
        %654 = vmatprep.subr.mxu0 0.0
        %655 = vmatpush1.msra.mxu0 0.0
        %656 = vmatprep.subr.mxu0 0.0
        %657 = vmatpush1.msra.mxu0 0.0
        %658 = vmatprep.subr.mxu0 0.0
        %659 = vmatpush1.msra.mxu0 0.0
        %660 = vmatprep.subr.mxu0 0.0
        %661 = vmatpush1.msra.mxu0 0.0
        %662 = vmatprep.subr.mxu0 0.0
        %663 = vmatpush1.msra.mxu0 0.0
        %664 = vmatprep.subr.mxu0 0.0
        %665 = vmatpush1.msra.mxu0 0.0
        %666 = vmatprep.subr.mxu0 0.0
        %667 = vmatpush1.msra.mxu0 0.0
        %668 = vmatprep.subr.mxu0 0.0
        %669 = vmatpush1.msra.mxu0 0.0
        %670 = vmatprep.subr.mxu0 0.0
        %671 = vmatpush1.msra.mxu0 0.0
        %672 = vmatprep.subr.mxu0 0.0
        %673 = vmatpush1.msra.mxu0 0.0
        %674 = vmatprep.subr.mxu0 0.0
        %675 = vmatpush1.msra.mxu0 0.0
        %676 = vmatprep.subr.mxu0 0.0
        %677 = vmatpush1.msra.mxu0 0.0
        %678 = vmatprep.subr.mxu0 0.0
        %679 = vmatpush1.msra.mxu0 0.0
        %680 = vmatprep.subr.mxu0 0.0
        %681 = vmatpush1.msra.mxu0 0.0
        %682 = vmatprep.subr.mxu0 0.0
        %683 = vmatpush1.msra.mxu0 0.0
        %684 = vmatprep.subr.mxu0 0.0
        %685 = vmatpush1.msra.mxu0 0.0
        %686 = vmatprep.subr.mxu0 0.0
        %687 = vmatpush1.msra.mxu0 0.0
        %688 = vmatprep.subr.mxu0 0.0
        %689 = vmatpush1.msra.mxu0 0.0
        %690 = vmatprep.subr.mxu0 0.0
        %691 = vmatpush1.msra.mxu0 0.0
        %692 = vmatprep.subr.mxu0 0.0
        %693 = vmatpush1.msra.mxu0 0.0
        %694 = vmatprep.mubr.f32.mxu0 0.0
        %v695 = vand.u32 %v240, 4294901760
        %696 = vmatmul.mubr.f32.gmra.mrb[0].mxu0 %v695
        %v697 = vpop.f32.mrb[0].mxu0
        %v698 = vadd.f32 %v625, %v697
        %v699 = vpop.f32.mrb[0].mxu0
        %700 = vdwg.mxu0
        %v701 = vmax.f32 %v698, 0.0
        %v702 = vld [vmem:[%s2] sm:$0xff]
        %v703 = vld [vmem:[%s2 + $0x8] sm:$0xff]
        %v704 = vld [vmem:[%s2 + $0x10] sm:$0xff]
        %v705 = vld [vmem:[%s2 + $0x18] sm:$0xff]
        %v706 = vld [vmem:[%s2 + $0x20] sm:$0xff]
        %vm707 = vcmask 326656
        %v709 = vsel %vm707, %v701, 0
        %711 = vmatprep.subr.mxu0 0.0
        %v712 = vand.u32 %v702, 4294901760
        %713 = vmatpush1.msra.mxu0 %v712
        %714 = vmatprep.subr.mxu0 0.0
        %v715 = vand.u32 %v703, 4294901760
        %716 = vmatpush1.msra.mxu0 %v715
        %717 = vmatprep.subr.mxu0 0.0
        %v718 = vand.u32 %v704, 4294901760
        %719 = vmatpush1.msra.mxu0 %v718
        %720 = vmatprep.subr.mxu0 0.0
        %v721 = vand.u32 %v705, 4294901760
        %722 = vmatpush1.msra.mxu0 %v721
        %723 = vmatprep.subr.mxu0 0.0
        %v724 = vand.u32 %v706, 4294901760
        %725 = vmatpush1.msra.mxu0 %v724
        %726 = vmatprep.subr.mxu0 0.0
        %727 = vmatpush1.msra.mxu0 0.0
        %728 = vmatprep.subr.mxu0 0.0
        %729 = vmatpush1.msra.mxu0 0.0
        %730 = vmatprep.subr.mxu0 0.0
        %731 = vmatpush1.msra.mxu0 0.0
        %732 = vmatprep.subr.mxu0 0.0
        %733 = vmatpush1.msra.mxu0 0.0
        %734 = vmatprep.subr.mxu0 0.0
        %735 = vmatpush1.msra.mxu0 0.0
        %736 = vmatprep.subr.mxu0 0.0
        %737 = vmatpush1.msra.mxu0 0.0
        %738 = vmatprep.subr.mxu0 0.0
        %739 = vmatpush1.msra.mxu0 0.0
        %740 = vmatprep.subr.mxu0 0.0
        %741 = vmatpush1.msra.mxu0 0.0
        %742 = vmatprep.subr.mxu0 0.0
        %743 = vmatpush1.msra.mxu0 0.0
        %744 = vmatprep.subr.mxu0 0.0
        %745 = vmatpush1.msra.mxu0 0.0
        %746 = vmatprep.subr.mxu0 0.0
        %747 = vmatpush1.msra.mxu0 0.0
        %748 = vmatprep.subr.mxu0 0.0
        %749 = vmatpush1.msra.mxu0 0.0
        %750 = vmatprep.subr.mxu0 0.0
        %751 = vmatpush1.msra.mxu0 0.0
        %752 = vmatprep.subr.mxu0 0.0
        %753 = vmatpush1.msra.mxu0 0.0
        %754 = vmatprep.subr.mxu0 0.0
        %755 = vmatpush1.msra.mxu0 0.0
        %756 = vmatprep.subr.mxu0 0.0
        %757 = vmatpush1.msra.mxu0 0.0
        %758 = vmatprep.subr.mxu0 0.0
        %759 = vmatpush1.msra.mxu0 0.0
        %760 = vmatprep.subr.mxu0 0.0
        %761 = vmatpush1.msra.mxu0 0.0
        %762 = vmatprep.subr.mxu0 0.0
        %763 = vmatpush1.msra.mxu0 0.0
        %764 = vmatprep.subr.mxu0 0.0
        %765 = vmatpush1.msra.mxu0 0.0
        %766 = vmatprep.subr.mxu0 0.0
        %767 = vmatpush1.msra.mxu0 0.0
        %768 = vmatprep.subr.mxu0 0.0
        %769 = vmatpush1.msra.mxu0 0.0
        %770 = vmatprep.subr.mxu0 0.0
        %771 = vmatpush1.msra.mxu0 0.0
        %772 = vmatprep.subr.mxu0 0.0
        %773 = vmatpush1.msra.mxu0 0.0
        %774 = vmatprep.subr.mxu0 0.0
        %775 = vmatpush1.msra.mxu0 0.0
        %776 = vmatprep.subr.mxu0 0.0
        %777 = vmatpush1.msra.mxu0 0.0
        %778 = vmatprep.subr.mxu0 0.0
        %779 = vmatpush1.msra.mxu0 0.0
        %780 = vmatprep.mubr.f32.mxu0 0.0
        %v781 = vand.u32 %v709, 4294901760
        %v782 = vsub.f32 %v709, %v781
        %v783 = vand.u32 %v782, 4294901760
        %v784 = vsub.f32 %v782, %v783
        %v785 = vand.u32 %v784, 4294901760
        %786 = vmatmul.mubr.f32.gmra.mrb[0].mxu0 %v785
        %v787 = vpop.f32.mrb[0].mxu0
        %v788 = vadd.f32 0.0, %v787
        %v789 = vpop.f32.mrb[0].mxu0
        %790 = vdwg.mxu0
        %791 = vmatprep.subr.mxu0 0.0
        %v792 = vand.u32 %v702, 4294901760
        %v793 = vsub.f32 %v702, %v792
        %v794 = vand.u32 %v793, 4294901760
        %v795 = vsub.f32 %v793, %v794
        %v796 = vand.u32 %v795, 4294901760
        %797 = vmatpush1.msra.mxu0 %v796
        %798 = vmatprep.subr.mxu0 0.0
        %v799 = vand.u32 %v703, 4294901760
        %v800 = vsub.f32 %v703, %v799
        %v801 = vand.u32 %v800, 4294901760
        %v802 = vsub.f32 %v800, %v801
        %v803 = vand.u32 %v802, 4294901760
        %804 = vmatpush1.msra.mxu0 %v803
        %805 = vmatprep.subr.mxu0 0.0
        %v806 = vand.u32 %v704, 4294901760
        %v807 = vsub.f32 %v704, %v806
        %v808 = vand.u32 %v807, 4294901760
        %v809 = vsub.f32 %v807, %v808
        %v810 = vand.u32 %v809, 4294901760
        %811 = vmatpush1.msra.mxu0 %v810
        %812 = vmatprep.subr.mxu0 0.0
        %v813 = vand.u32 %v705, 4294901760
        %v814 = vsub.f32 %v705, %v813
        %v815 = vand.u32 %v814, 4294901760
        %v816 = vsub.f32 %v814, %v815
        %v817 = vand.u32 %v816, 4294901760
        %818 = vmatpush1.msra.mxu0 %v817
        %819 = vmatprep.subr.mxu0 0.0
        %v820 = vand.u32 %v706, 4294901760
        %v821 = vsub.f32 %v706, %v820
        %v822 = vand.u32 %v821, 4294901760
        %v823 = vsub.f32 %v821, %v822
        %v824 = vand.u32 %v823, 4294901760
        %825 = vmatpush1.msra.mxu0 %v824
        %826 = vmatprep.subr.mxu0 0.0
        %827 = vmatpush1.msra.mxu0 0.0
        %828 = vmatprep.subr.mxu0 0.0
        %829 = vmatpush1.msra.mxu0 0.0
        %830 = vmatprep.subr.mxu0 0.0
        %831 = vmatpush1.msra.mxu0 0.0
        %832 = vmatprep.subr.mxu0 0.0
        %833 = vmatpush1.msra.mxu0 0.0
        %834 = vmatprep.subr.mxu0 0.0
        %835 = vmatpush1.msra.mxu0 0.0
        %836 = vmatprep.subr.mxu0 0.0
        %837 = vmatpush1.msra.mxu0 0.0
        %838 = vmatprep.subr.mxu0 0.0
        %839 = vmatpush1.msra.mxu0 0.0
        %840 = vmatprep.subr.mxu0 0.0
        %841 = vmatpush1.msra.mxu0 0.0
        %842 = vmatprep.subr.mxu0 0.0
        %843 = vmatpush1.msra.mxu0 0.0
        %844 = vmatprep.subr.mxu0 0.0
        %845 = vmatpush1.msra.mxu0 0.0
        %846 = vmatprep.subr.mxu0 0.0
        %847 = vmatpush1.msra.mxu0 0.0
        %848 = vmatprep.subr.mxu0 0.0
        %849 = vmatpush1.msra.mxu0 0.0
        %850 = vmatprep.subr.mxu0 0.0
        %851 = vmatpush1.msra.mxu0 0.0
        %852 = vmatprep.subr.mxu0 0.0
        %853 = vmatpush1.msra.mxu0 0.0
        %854 = vmatprep.subr.mxu0 0.0
        %855 = vmatpush1.msra.mxu0 0.0
        %856 = vmatprep.subr.mxu0 0.0
        %857 = vmatpush1.msra.mxu0 0.0
        %858 = vmatprep.subr.mxu0 0.0
        %859 = vmatpush1.msra.mxu0 0.0
        %860 = vmatprep.subr.mxu0 0.0
        %861 = vmatpush1.msra.mxu0 0.0
        %862 = vmatprep.subr.mxu0 0.0
        %863 = vmatpush1.msra.mxu0 0.0
        %864 = vmatprep.subr.mxu0 0.0
        %865 = vmatpush1.msra.mxu0 0.0
        %866 = vmatprep.subr.mxu0 0.0
        %867 = vmatpush1.msra.mxu0 0.0
        %868 = vmatprep.subr.mxu0 0.0
        %869 = vmatpush1.msra.mxu0 0.0
        %870 = vmatprep.subr.mxu0 0.0
        %871 = vmatpush1.msra.mxu0 0.0
        %872 = vmatprep.subr.mxu0 0.0
        %873 = vmatpush1.msra.mxu0 0.0
        %874 = vmatprep.subr.mxu0 0.0
        %875 = vmatpush1.msra.mxu0 0.0
        %876 = vmatprep.subr.mxu0 0.0
        %877 = vmatpush1.msra.mxu0 0.0
        %878 = vmatprep.subr.mxu0 0.0
        %879 = vmatpush1.msra.mxu0 0.0
        %880 = vmatprep.mubr.f32.mxu0 0.0
        %v881 = vand.u32 %v709, 4294901760
        %882 = vmatmul.mubr.f32.gmra.mrb[0].mxu0 %v881
        %v883 = vpop.f32.mrb[0].mxu0
        %v884 = vadd.f32 %v788, %v883
        %v885 = vpop.f32.mrb[0].mxu0
        %886 = vdwg.mxu0
        %887 = vmatprep.subr.mxu0 0.0
        %v888 = vand.u32 %v702, 4294901760
        %v889 = vsub.f32 %v702, %v888
        %890 = vmatpush1.msra.mxu0 %v889
        %891 = vmatprep.subr.mxu0 0.0
        %v892 = vand.u32 %v703, 4294901760
        %v893 = vsub.f32 %v703, %v892
        %894 = vmatpush1.msra.mxu0 %v893
        %895 = vmatprep.subr.mxu0 0.0
        %v896 = vand.u32 %v704, 4294901760
        %v897 = vsub.f32 %v704, %v896
        %898 = vmatpush1.msra.mxu0 %v897
        %899 = vmatprep.subr.mxu0 0.0
        %v900 = vand.u32 %v705, 4294901760
        %v901 = vsub.f32 %v705, %v900
        %902 = vmatpush1.msra.mxu0 %v901
        %903 = vmatprep.subr.mxu0 0.0
        %v904 = vand.u32 %v706, 4294901760
        %v905 = vsub.f32 %v706, %v904
        %906 = vmatpush1.msra.mxu0 %v905
        %907 = vmatprep.subr.mxu0 0.0
        %908 = vmatpush1.msra.mxu0 0.0
        %909 = vmatprep.subr.mxu0 0.0
        %910 = vmatpush1.msra.mxu0 0.0
        %911 = vmatprep.subr.mxu0 0.0
        %912 = vmatpush1.msra.mxu0 0.0
        %913 = vmatprep.subr.mxu0 0.0
        %914 = vmatpush1.msra.mxu0 0.0
        %915 = vmatprep.subr.mxu0 0.0
        %916 = vmatpush1.msra.mxu0 0.0
        %917 = vmatprep.subr.mxu0 0.0
        %918 = vmatpush1.msra.mxu0 0.0
        %919 = vmatprep.subr.mxu0 0.0
        %920 = vmatpush1.msra.mxu0 0.0
        %921 = vmatprep.subr.mxu0 0.0
        %922 = vmatpush1.msra.mxu0 0.0
        %923 = vmatprep.subr.mxu0 0.0
        %924 = vmatpush1.msra.mxu0 0.0
        %925 = vmatprep.subr.mxu0 0.0
        %926 = vmatpush1.msra.mxu0 0.0
        %927 = vmatprep.subr.mxu0 0.0
        %928 = vmatpush1.msra.mxu0 0.0
        %929 = vmatprep.subr.mxu0 0.0
        %930 = vmatpush1.msra.mxu0 0.0
        %931 = vmatprep.subr.mxu0 0.0
        %932 = vmatpush1.msra.mxu0 0.0
        %933 = vmatprep.subr.mxu0 0.0
        %934 = vmatpush1.msra.mxu0 0.0
        %935 = vmatprep.subr.mxu0 0.0
        %936 = vmatpush1.msra.mxu0 0.0
        %937 = vmatprep.subr.mxu0 0.0
        %938 = vmatpush1.msra.mxu0 0.0
        %939 = vmatprep.subr.mxu0 0.0
        %940 = vmatpush1.msra.mxu0 0.0
        %941 = vmatprep.subr.mxu0 0.0
        %942 = vmatpush1.msra.mxu0 0.0
        %943 = vmatprep.subr.mxu0 0.0
        %944 = vmatpush1.msra.mxu0 0.0
        %945 = vmatprep.subr.mxu0 0.0
        %946 = vmatpush1.msra.mxu0 0.0
        %947 = vmatprep.subr.mxu0 0.0
        %948 = vmatpush1.msra.mxu0 0.0
        %949 = vmatprep.subr.mxu0 0.0
        %950 = vmatpush1.msra.mxu0 0.0
        %951 = vmatprep.subr.mxu0 0.0
        %952 = vmatpush1.msra.mxu0 0.0
        %953 = vmatprep.subr.mxu0 0.0
        %954 = vmatpush1.msra.mxu0 0.0
        %955 = vmatprep.subr.mxu0 0.0
        %956 = vmatpush1.msra.mxu0 0.0
        %957 = vmatprep.subr.mxu0 0.0
        %958 = vmatpush1.msra.mxu0 0.0
        %959 = vmatprep.subr.mxu0 0.0
        %960 = vmatpush1.msra.mxu0 0.0
        %961 = vmatprep.mubr.f32.mxu0 0.0
        %v962 = vand.u32 %v709, 4294901760
        %v963 = vsub.f32 %v709, %v962
        %964 = vmatmul.mubr.f32.gmra.mrb[0].mxu0 %v963
        %v965 = vpop.f32.mrb[0].mxu0
        %v966 = vadd.f32 %v884, %v965
        %v967 = vpop.f32.mrb[0].mxu0
        %968 = vdwg.mxu0
        %969 = vmatprep.subr.mxu0 0.0
        %v970 = vand.u32 %v702, 4294901760
        %971 = vmatpush1.msra.mxu0 %v970
        %972 = vmatprep.subr.mxu0 0.0
        %v973 = vand.u32 %v703, 4294901760
        %974 = vmatpush1.msra.mxu0 %v973
        %975 = vmatprep.subr.mxu0 0.0
        %v976 = vand.u32 %v704, 4294901760
        %977 = vmatpush1.msra.mxu0 %v976
        %978 = vmatprep.subr.mxu0 0.0
        %v979 = vand.u32 %v705, 4294901760
        %980 = vmatpush1.msra.mxu0 %v979
        %981 = vmatprep.subr.mxu0 0.0
        %v982 = vand.u32 %v706, 4294901760
        %983 = vmatpush1.msra.mxu0 %v982
        %984 = vmatprep.subr.mxu0 0.0
        %985 = vmatpush1.msra.mxu0 0.0
        %986 = vmatprep.subr.mxu0 0.0
        %987 = vmatpush1.msra.mxu0 0.0
        %988 = vmatprep.subr.mxu0 0.0
        %989 = vmatpush1.msra.mxu0 0.0
        %990 = vmatprep.subr.mxu0 0.0
        %991 = vmatpush1.msra.mxu0 0.0
        %992 = vmatprep.subr.mxu0 0.0
        %993 = vmatpush1.msra.mxu0 0.0
        %994 = vmatprep.subr.mxu0 0.0
        %995 = vmatpush1.msra.mxu0 0.0
        %996 = vmatprep.subr.mxu0 0.0
        %997 = vmatpush1.msra.mxu0 0.0
        %998 = vmatprep.subr.mxu0 0.0
        %999 = vmatpush1.msra.mxu0 0.0
        %1000 = vmatprep.subr.mxu0 0.0
        %1001 = vmatpush1.msra.mxu0 0.0
        %1002 = vmatprep.subr.mxu0 0.0
        %1003 = vmatpush1.msra.mxu0 0.0
        %1004 = vmatprep.subr.mxu0 0.0
        %1005 = vmatpush1.msra.mxu0 0.0
        %1006 = vmatprep.subr.mxu0 0.0
        %1007 = vmatpush1.msra.mxu0 0.0
        %1008 = vmatprep.subr.mxu0 0.0
        %1009 = vmatpush1.msra.mxu0 0.0
        %1010 = vmatprep.subr.mxu0 0.0
        %1011 = vmatpush1.msra.mxu0 0.0
        %1012 = vmatprep.subr.mxu0 0.0
        %1013 = vmatpush1.msra.mxu0 0.0
        %1014 = vmatprep.subr.mxu0 0.0
        %1015 = vmatpush1.msra.mxu0 0.0
        %1016 = vmatprep.subr.mxu0 0.0
        %1017 = vmatpush1.msra.mxu0 0.0
        %1018 = vmatprep.subr.mxu0 0.0
        %1019 = vmatpush1.msra.mxu0 0.0
        %1020 = vmatprep.subr.mxu0 0.0
        %1021 = vmatpush1.msra.mxu0 0.0
        %1022 = vmatprep.subr.mxu0 0.0
        %1023 = vmatpush1.msra.mxu0 0.0
        %1024 = vmatprep.subr.mxu0 0.0
        %1025 = vmatpush1.msra.mxu0 0.0
        %1026 = vmatprep.subr.mxu0 0.0
        %1027 = vmatpush1.msra.mxu0 0.0
        %1028 = vmatprep.subr.mxu0 0.0
        %1029 = vmatpush1.msra.mxu0 0.0
        %1030 = vmatprep.subr.mxu0 0.0
        %1031 = vmatpush1.msra.mxu0 0.0
        %1032 = vmatprep.subr.mxu0 0.0
        %1033 = vmatpush1.msra.mxu0 0.0
        %1034 = vmatprep.subr.mxu0 0.0
        %1035 = vmatpush1.msra.mxu0 0.0
        %1036 = vmatprep.subr.mxu0 0.0
        %1037 = vmatpush1.msra.mxu0 0.0
        %1038 = vmatprep.mubr.f32.mxu0 0.0
        %v1039 = vand.u32 %v709, 4294901760
        %v1040 = vsub.f32 %v709, %v1039
        %v1041 = vand.u32 %v1040, 4294901760
        %1042 = vmatmul.mubr.f32.gmra.mrb[0].mxu0 %v1041
        %v1043 = vpop.f32.mrb[0].mxu0
        %v1044 = vadd.f32 %v966, %v1043
        %v1045 = vpop.f32.mrb[0].mxu0
        %1046 = vdwg.mxu0
        %1047 = vmatprep.subr.mxu0 0.0
        %v1048 = vand.u32 %v702, 4294901760
        %v1049 = vsub.f32 %v702, %v1048
        %v1050 = vand.u32 %v1049, 4294901760
        %1051 = vmatpush1.msra.mxu0 %v1050
        %1052 = vmatprep.subr.mxu0 0.0
        %v1053 = vand.u32 %v703, 4294901760
        %v1054 = vsub.f32 %v703, %v1053
        %v1055 = vand.u32 %v1054, 4294901760
        %1056 = vmatpush1.msra.mxu0 %v1055
        %1057 = vmatprep.subr.mxu0 0.0
        %v1058 = vand.u32 %v704, 4294901760
        %v1059 = vsub.f32 %v704, %v1058
        %v1060 = vand.u32 %v1059, 4294901760
        %1061 = vmatpush1.msra.mxu0 %v1060
        %1062 = vmatprep.subr.mxu0 0.0
        %v1063 = vand.u32 %v705, 4294901760
        %v1064 = vsub.f32 %v705, %v1063
        %v1065 = vand.u32 %v1064, 4294901760
        %1066 = vmatpush1.msra.mxu0 %v1065
        %1067 = vmatprep.subr.mxu0 0.0
        %v1068 = vand.u32 %v706, 4294901760
        %v1069 = vsub.f32 %v706, %v1068
        %v1070 = vand.u32 %v1069, 4294901760
        %1071 = vmatpush1.msra.mxu0 %v1070
        %1072 = vmatprep.subr.mxu0 0.0
        %1073 = vmatpush1.msra.mxu0 0.0
        %1074 = vmatprep.subr.mxu0 0.0
        %1075 = vmatpush1.msra.mxu0 0.0
        %1076 = vmatprep.subr.mxu0 0.0
        %1077 = vmatpush1.msra.mxu0 0.0
        %1078 = vmatprep.subr.mxu0 0.0
        %1079 = vmatpush1.msra.mxu0 0.0
        %1080 = vmatprep.subr.mxu0 0.0
        %1081 = vmatpush1.msra.mxu0 0.0
        %1082 = vmatprep.subr.mxu0 0.0
        %1083 = vmatpush1.msra.mxu0 0.0
        %1084 = vmatprep.subr.mxu0 0.0
        %1085 = vmatpush1.msra.mxu0 0.0
        %1086 = vmatprep.subr.mxu0 0.0
        %1087 = vmatpush1.msra.mxu0 0.0
        %1088 = vmatprep.subr.mxu0 0.0
        %1089 = vmatpush1.msra.mxu0 0.0
        %1090 = vmatprep.subr.mxu0 0.0
        %1091 = vmatpush1.msra.mxu0 0.0
        %1092 = vmatprep.subr.mxu0 0.0
        %1093 = vmatpush1.msra.mxu0 0.0
        %1094 = vmatprep.subr.mxu0 0.0
        %1095 = vmatpush1.msra.mxu0 0.0
        %1096 = vmatprep.subr.mxu0 0.0
        %1097 = vmatpush1.msra.mxu0 0.0
        %1098 = vmatprep.subr.mxu0 0.0
        %1099 = vmatpush1.msra.mxu0 0.0
        %1100 = vmatprep.subr.mxu0 0.0
        %1101 = vmatpush1.msra.mxu0 0.0
        %1102 = vmatprep.subr.mxu0 0.0
        %1103 = vmatpush1.msra.mxu0 0.0
        %1104 = vmatprep.subr.mxu0 0.0
        %1105 = vmatpush1.msra.mxu0 0.0
        %1106 = vmatprep.subr.mxu0 0.0
        %1107 = vmatpush1.msra.mxu0 0.0
        %1108 = vmatprep.subr.mxu0 0.0
        %1109 = vmatpush1.msra.mxu0 0.0
        %1110 = vmatprep.subr.mxu0 0.0
        %1111 = vmatpush1.msra.mxu0 0.0
        %1112 = vmatprep.subr.mxu0 0.0
        %1113 = vmatpush1.msra.mxu0 0.0
        %1114 = vmatprep.subr.mxu0 0.0
        %1115 = vmatpush1.msra.mxu0 0.0
        %1116 = vmatprep.subr.mxu0 0.0
        %1117 = vmatpush1.msra.mxu0 0.0
        %1118 = vmatprep.subr.mxu0 0.0
        %1119 = vmatpush1.msra.mxu0 0.0
        %1120 = vmatprep.subr.mxu0 0.0
        %1121 = vmatpush1.msra.mxu0 0.0
        %1122 = vmatprep.subr.mxu0 0.0
        %1123 = vmatpush1.msra.mxu0 0.0
        %1124 = vmatprep.subr.mxu0 0.0
        %1125 = vmatpush1.msra.mxu0 0.0
        %1126 = vmatprep.mubr.f32.mxu0 0.0
        %v1127 = vand.u32 %v709, 4294901760
        %1128 = vmatmul.mubr.f32.gmra.mrb[0].mxu0 %v1127
        %v1129 = vpop.f32.mrb[0].mxu0
        %v1130 = vadd.f32 %v1044, %v1129
        %v1131 = vpop.f32.mrb[0].mxu0
        %1132 = vdwg.mxu0
        %1133 = vmatprep.subr.mxu0 0.0
        %v1134 = vand.u32 %v702, 4294901760
        %1135 = vmatpush1.msra.mxu0 %v1134
        %1136 = vmatprep.subr.mxu0 0.0
        %v1137 = vand.u32 %v703, 4294901760
        %1138 = vmatpush1.msra.mxu0 %v1137
        %1139 = vmatprep.subr.mxu0 0.0
        %v1140 = vand.u32 %v704, 4294901760
        %1141 = vmatpush1.msra.mxu0 %v1140
        %1142 = vmatprep.subr.mxu0 0.0
        %v1143 = vand.u32 %v705, 4294901760
        %1144 = vmatpush1.msra.mxu0 %v1143
        %1145 = vmatprep.subr.mxu0 0.0
        %v1146 = vand.u32 %v706, 4294901760
        %1147 = vmatpush1.msra.mxu0 %v1146
        %1148 = vmatprep.subr.mxu0 0.0
        %1149 = vmatpush1.msra.mxu0 0.0
        %1150 = vmatprep.subr.mxu0 0.0
        %1151 = vmatpush1.msra.mxu0 0.0
        %1152 = vmatprep.subr.mxu0 0.0
        %1153 = vmatpush1.msra.mxu0 0.0
        %1154 = vmatprep.subr.mxu0 0.0
        %1155 = vmatpush1.msra.mxu0 0.0
        %1156 = vmatprep.subr.mxu0 0.0
        %1157 = vmatpush1.msra.mxu0 0.0
        %1158 = vmatprep.subr.mxu0 0.0
        %1159 = vmatpush1.msra.mxu0 0.0
        %1160 = vmatprep.subr.mxu0 0.0
        %1161 = vmatpush1.msra.mxu0 0.0
        %1162 = vmatprep.subr.mxu0 0.0
        %1163 = vmatpush1.msra.mxu0 0.0
        %1164 = vmatprep.subr.mxu0 0.0
        %1165 = vmatpush1.msra.mxu0 0.0
        %1166 = vmatprep.subr.mxu0 0.0
        %1167 = vmatpush1.msra.mxu0 0.0
        %1168 = vmatprep.subr.mxu0 0.0
        %1169 = vmatpush1.msra.mxu0 0.0
        %1170 = vmatprep.subr.mxu0 0.0
        %1171 = vmatpush1.msra.mxu0 0.0
        %1172 = vmatprep.subr.mxu0 0.0
        %1173 = vmatpush1.msra.mxu0 0.0
        %1174 = vmatprep.subr.mxu0 0.0
        %1175 = vmatpush1.msra.mxu0 0.0
        %1176 = vmatprep.subr.mxu0 0.0
        %1177 = vmatpush1.msra.mxu0 0.0
        %1178 = vmatprep.subr.mxu0 0.0
        %1179 = vmatpush1.msra.mxu0 0.0
        %1180 = vmatprep.subr.mxu0 0.0
        %1181 = vmatpush1.msra.mxu0 0.0
        %1182 = vmatprep.subr.mxu0 0.0
        %1183 = vmatpush1.msra.mxu0 0.0
        %1184 = vmatprep.subr.mxu0 0.0
        %1185 = vmatpush1.msra.mxu0 0.0
        %1186 = vmatprep.subr.mxu0 0.0
        %1187 = vmatpush1.msra.mxu0 0.0
        %1188 = vmatprep.subr.mxu0 0.0
        %1189 = vmatpush1.msra.mxu0 0.0
        %1190 = vmatprep.subr.mxu0 0.0
        %1191 = vmatpush1.msra.mxu0 0.0
        %1192 = vmatprep.subr.mxu0 0.0
        %1193 = vmatpush1.msra.mxu0 0.0
        %1194 = vmatprep.subr.mxu0 0.0
        %1195 = vmatpush1.msra.mxu0 0.0
        %1196 = vmatprep.subr.mxu0 0.0
        %1197 = vmatpush1.msra.mxu0 0.0
        %1198 = vmatprep.subr.mxu0 0.0
        %1199 = vmatpush1.msra.mxu0 0.0
        %1200 = vmatprep.subr.mxu0 0.0
        %1201 = vmatpush1.msra.mxu0 0.0
        %1202 = vmatprep.mubr.f32.mxu0 0.0
        %v1203 = vand.u32 %v709, 4294901760
        %1204 = vmatmul.mubr.f32.gmra.mrb[0].mxu0 %v1203
        %v1205 = vpop.f32.mrb[0].mxu0
        %v1206 = vadd.f32 %v1130, %v1205
        %v1207 = vpop.f32.mrb[0].mxu0
        %1208 = vdwg.mxu0
        %v1209 = vadd.f32 %v1206, %v226
        %v1210 = vsub.f32 %v1206, %v228
        %v1211 = vmul.f32 %v1210, %v1210
        %v1212 = vlaneseq
        %v1213 = vshrl.u32 %v1212, 7
        %v1214 = vadd.s32 %v1213, 8
        %v1215 = vlaneseq
        %v1216 = vand.u32 %v1215, 127
        %v1217 = vmul.u32 %v1216, 2
        %vm1218 = vcmp.ge.s32.totalorder %v1213, %v1217
        %vm1219 = vcmp.ge.s32.totalorder %v1214, %v1217
        %v1220 = vadd.s32 %v1217, 2
        %vm1221 = vcmp.lt.s32.totalorder %v1213, %v1220
        %vm1222 = vcmp.lt.s32.totalorder %v1214, %v1220
        %vm1223 = vmand %vm1218, %vm1221
        %vm1224 = vmand %vm1219, %vm1222
        %v1225 = vsel %vm1223, 1, 0
        %v1226 = vsel %vm1224, 1, 0
        %v1227 = vcvt.s32.f32 %v1225
        %v1228 = vcvt.s32.f32 %v1226
        %v1229 = vmul.f32 %v1227, 0.5
        %v1230 = vmul.f32 %v1228, 0.5
        %v1232 = vsel %vm238, %v1211, 0
        %1234 = vmatprep.subr.mxu0 0.0
        %v1235 = vand.u32 %v1229, 4294901760
        %1236 = vmatpush1.msra.mxu0 %v1235
        %1237 = vmatprep.subr.mxu0 0.0
        %v1238 = vand.u32 %v1230, 4294901760
        %1239 = vmatpush1.msra.mxu0 %v1238
        %1240 = vmatprep.subr.mxu0 0.0
        %1241 = vmatpush1.msra.mxu0 0.0
        %1242 = vmatprep.subr.mxu0 0.0
        %1243 = vmatpush1.msra.mxu0 0.0
        %1244 = vmatprep.subr.mxu0 0.0
        %1245 = vmatpush1.msra.mxu0 0.0
        %1246 = vmatprep.subr.mxu0 0.0
        %1247 = vmatpush1.msra.mxu0 0.0
        %1248 = vmatprep.subr.mxu0 0.0
        %1249 = vmatpush1.msra.mxu0 0.0
        %1250 = vmatprep.subr.mxu0 0.0
        %1251 = vmatpush1.msra.mxu0 0.0
        %1252 = vmatprep.subr.mxu0 0.0
        %1253 = vmatpush1.msra.mxu0 0.0
        %1254 = vmatprep.subr.mxu0 0.0
        %1255 = vmatpush1.msra.mxu0 0.0
        %1256 = vmatprep.subr.mxu0 0.0
        %1257 = vmatpush1.msra.mxu0 0.0
        %1258 = vmatprep.subr.mxu0 0.0
        %1259 = vmatpush1.msra.mxu0 0.0
        %1260 = vmatprep.subr.mxu0 0.0
        %1261 = vmatpush1.msra.mxu0 0.0
        %1262 = vmatprep.subr.mxu0 0.0
        %1263 = vmatpush1.msra.mxu0 0.0
        %1264 = vmatprep.subr.mxu0 0.0
        %1265 = vmatpush1.msra.mxu0 0.0
        %1266 = vmatprep.subr.mxu0 0.0
        %1267 = vmatpush1.msra.mxu0 0.0
        %1268 = vmatprep.subr.mxu0 0.0
        %1269 = vmatpush1.msra.mxu0 0.0
        %1270 = vmatprep.subr.mxu0 0.0
        %1271 = vmatpush1.msra.mxu0 0.0
        %1272 = vmatprep.subr.mxu0 0.0
        %1273 = vmatpush1.msra.mxu0 0.0
        %1274 = vmatprep.subr.mxu0 0.0
        %1275 = vmatpush1.msra.mxu0 0.0
        %1276 = vmatprep.subr.mxu0 0.0
        %1277 = vmatpush1.msra.mxu0 0.0
        %1278 = vmatprep.subr.mxu0 0.0
        %1279 = vmatpush1.msra.mxu0 0.0
        %1280 = vmatprep.subr.mxu0 0.0
        %1281 = vmatpush1.msra.mxu0 0.0
        %1282 = vmatprep.subr.mxu0 0.0
        %1283 = vmatpush1.msra.mxu0 0.0
        %1284 = vmatprep.subr.mxu0 0.0
        %1285 = vmatpush1.msra.mxu0 0.0
        %1286 = vmatprep.subr.mxu0 0.0
        %1287 = vmatpush1.msra.mxu0 0.0
        %1288 = vmatprep.subr.mxu0 0.0
        %1289 = vmatpush1.msra.mxu0 0.0
        %1290 = vmatprep.subr.mxu0 0.0
        %1291 = vmatpush1.msra.mxu0 0.0
        %1292 = vmatprep.subr.mxu0 0.0
        %1293 = vmatpush1.msra.mxu0 0.0
        %1294 = vmatprep.subr.mxu0 0.0
        %1295 = vmatpush1.msra.mxu0 0.0
        %1296 = vmatprep.subr.mxu0 0.0
        %1297 = vmatpush1.msra.mxu0 0.0
        %1298 = vmatprep.subr.mxu0 0.0
        %1299 = vmatpush1.msra.mxu0 0.0
        %1300 = vmatprep.mubr.f32.mxu0 0.0
        %v1301 = vand.u32 %v1232, 4294901760
        %v1302 = vsub.f32 %v1232, %v1301
        %v1303 = vand.u32 %v1302, 4294901760
        %v1304 = vsub.f32 %v1302, %v1303
        %v1305 = vand.u32 %v1304, 4294901760
        %1306 = vmatmul.mubr.f32.gmra.mrb[0].mxu0 %v1305
        %v1307 = vpop.f32.mrb[0].mxu0
        %v1308 = vadd.f32 0.0, %v1307
        %v1309 = vpop.f32.mrb[0].mxu0
        %1310 = vdwg.mxu0
        %1311 = vmatprep.subr.mxu0 0.0
        %v1312 = vand.u32 %v1229, 4294901760
        %v1313 = vsub.f32 %v1229, %v1312
        %v1314 = vand.u32 %v1313, 4294901760
        %v1315 = vsub.f32 %v1313, %v1314
        %v1316 = vand.u32 %v1315, 4294901760
        %1317 = vmatpush1.msra.mxu0 %v1316
        %1318 = vmatprep.subr.mxu0 0.0
        %v1319 = vand.u32 %v1230, 4294901760
        %v1320 = vsub.f32 %v1230, %v1319
        %v1321 = vand.u32 %v1320, 4294901760
        %v1322 = vsub.f32 %v1320, %v1321
        %v1323 = vand.u32 %v1322, 4294901760
        %1324 = vmatpush1.msra.mxu0 %v1323
        %1325 = vmatprep.subr.mxu0 0.0
        %1326 = vmatpush1.msra.mxu0 0.0
        %1327 = vmatprep.subr.mxu0 0.0
        %1328 = vmatpush1.msra.mxu0 0.0
        %1329 = vmatprep.subr.mxu0 0.0
        %1330 = vmatpush1.msra.mxu0 0.0
        %1331 = vmatprep.subr.mxu0 0.0
        %1332 = vmatpush1.msra.mxu0 0.0
        %1333 = vmatprep.subr.mxu0 0.0
        %1334 = vmatpush1.msra.mxu0 0.0
        %1335 = vmatprep.subr.mxu0 0.0
        %1336 = vmatpush1.msra.mxu0 0.0
        %1337 = vmatprep.subr.mxu0 0.0
        %1338 = vmatpush1.msra.mxu0 0.0
        %1339 = vmatprep.subr.mxu0 0.0
        %1340 = vmatpush1.msra.mxu0 0.0
        %1341 = vmatprep.subr.mxu0 0.0
        %1342 = vmatpush1.msra.mxu0 0.0
        %1343 = vmatprep.subr.mxu0 0.0
        %1344 = vmatpush1.msra.mxu0 0.0
        %1345 = vmatprep.subr.mxu0 0.0
        %1346 = vmatpush1.msra.mxu0 0.0
        %1347 = vmatprep.subr.mxu0 0.0
        %1348 = vmatpush1.msra.mxu0 0.0
        %1349 = vmatprep.subr.mxu0 0.0
        %1350 = vmatpush1.msra.mxu0 0.0
        %1351 = vmatprep.subr.mxu0 0.0
        %1352 = vmatpush1.msra.mxu0 0.0
        %1353 = vmatprep.subr.mxu0 0.0
        %1354 = vmatpush1.msra.mxu0 0.0
        %1355 = vmatprep.subr.mxu0 0.0
        %1356 = vmatpush1.msra.mxu0 0.0
        %1357 = vmatprep.subr.mxu0 0.0
        %1358 = vmatpush1.msra.mxu0 0.0
        %1359 = vmatprep.subr.mxu0 0.0
        %1360 = vmatpush1.msra.mxu0 0.0
        %1361 = vmatprep.subr.mxu0 0.0
        %1362 = vmatpush1.msra.mxu0 0.0
        %1363 = vmatprep.subr.mxu0 0.0
        %1364 = vmatpush1.msra.mxu0 0.0
        %1365 = vmatprep.subr.mxu0 0.0
        %1366 = vmatpush1.msra.mxu0 0.0
        %1367 = vmatprep.subr.mxu0 0.0
        %1368 = vmatpush1.msra.mxu0 0.0
        %1369 = vmatprep.subr.mxu0 0.0
        %1370 = vmatpush1.msra.mxu0 0.0
        %1371 = vmatprep.subr.mxu0 0.0
        %1372 = vmatpush1.msra.mxu0 0.0
        %1373 = vmatprep.subr.mxu0 0.0
        %1374 = vmatpush1.msra.mxu0 0.0
        %1375 = vmatprep.subr.mxu0 0.0
        %1376 = vmatpush1.msra.mxu0 0.0
        %1377 = vmatprep.subr.mxu0 0.0
        %1378 = vmatpush1.msra.mxu0 0.0
        %1379 = vmatprep.subr.mxu0 0.0
        %1380 = vmatpush1.msra.mxu0 0.0
        %1381 = vmatprep.subr.mxu0 0.0
        %1382 = vmatpush1.msra.mxu0 0.0
        %1383 = vmatprep.subr.mxu0 0.0
        %1384 = vmatpush1.msra.mxu0 0.0
        %1385 = vmatprep.mubr.f32.mxu0 0.0
        %v1386 = vand.u32 %v1232, 4294901760
        %1387 = vmatmul.mubr.f32.gmra.mrb[0].mxu0 %v1386
        %v1388 = vpop.f32.mrb[0].mxu0
        %v1389 = vadd.f32 %v1308, %v1388
        %v1390 = vpop.f32.mrb[0].mxu0
        %1391 = vdwg.mxu0
        %1392 = vmatprep.subr.mxu0 0.0
        %v1393 = vand.u32 %v1229, 4294901760
        %v1394 = vsub.f32 %v1229, %v1393
        %1395 = vmatpush1.msra.mxu0 %v1394
        %1396 = vmatprep.subr.mxu0 0.0
        %v1397 = vand.u32 %v1230, 4294901760
        %v1398 = vsub.f32 %v1230, %v1397
        %1399 = vmatpush1.msra.mxu0 %v1398
        %1400 = vmatprep.subr.mxu0 0.0
        %1401 = vmatpush1.msra.mxu0 0.0
        %1402 = vmatprep.subr.mxu0 0.0
        %1403 = vmatpush1.msra.mxu0 0.0
        %1404 = vmatprep.subr.mxu0 0.0
        %1405 = vmatpush1.msra.mxu0 0.0
        %1406 = vmatprep.subr.mxu0 0.0
        %1407 = vmatpush1.msra.mxu0 0.0
        %1408 = vmatprep.subr.mxu0 0.0
        %1409 = vmatpush1.msra.mxu0 0.0
        %1410 = vmatprep.subr.mxu0 0.0
        %1411 = vmatpush1.msra.mxu0 0.0
        %1412 = vmatprep.subr.mxu0 0.0
        %1413 = vmatpush1.msra.mxu0 0.0
        %1414 = vmatprep.subr.mxu0 0.0
        %1415 = vmatpush1.msra.mxu0 0.0
        %1416 = vmatprep.subr.mxu0 0.0
        %1417 = vmatpush1.msra.mxu0 0.0
        %1418 = vmatprep.subr.mxu0 0.0
        %1419 = vmatpush1.msra.mxu0 0.0
        %1420 = vmatprep.subr.mxu0 0.0
        %1421 = vmatpush1.msra.mxu0 0.0
        %1422 = vmatprep.subr.mxu0 0.0
        %1423 = vmatpush1.msra.mxu0 0.0
        %1424 = vmatprep.subr.mxu0 0.0
        %1425 = vmatpush1.msra.mxu0 0.0
        %1426 = vmatprep.subr.mxu0 0.0
        %1427 = vmatpush1.msra.mxu0 0.0
        %1428 = vmatprep.subr.mxu0 0.0
        %1429 = vmatpush1.msra.mxu0 0.0
        %1430 = vmatprep.subr.mxu0 0.0
        %1431 = vmatpush1.msra.mxu0 0.0
        %1432 = vmatprep.subr.mxu0 0.0
        %1433 = vmatpush1.msra.mxu0 0.0
        %1434 = vmatprep.subr.mxu0 0.0
        %1435 = vmatpush1.msra.mxu0 0.0
        %1436 = vmatprep.subr.mxu0 0.0
        %1437 = vmatpush1.msra.mxu0 0.0
        %1438 = vmatprep.subr.mxu0 0.0
        %1439 = vmatpush1.msra.mxu0 0.0
        %1440 = vmatprep.subr.mxu0 0.0
        %1441 = vmatpush1.msra.mxu0 0.0
        %1442 = vmatprep.subr.mxu0 0.0
        %1443 = vmatpush1.msra.mxu0 0.0
        %1444 = vmatprep.subr.mxu0 0.0
        %1445 = vmatpush1.msra.mxu0 0.0
        %1446 = vmatprep.subr.mxu0 0.0
        %1447 = vmatpush1.msra.mxu0 0.0
        %1448 = vmatprep.subr.mxu0 0.0
        %1449 = vmatpush1.msra.mxu0 0.0
        %1450 = vmatprep.subr.mxu0 0.0
        %1451 = vmatpush1.msra.mxu0 0.0
        %1452 = vmatprep.subr.mxu0 0.0
        %1453 = vmatpush1.msra.mxu0 0.0
        %1454 = vmatprep.subr.mxu0 0.0
        %1455 = vmatpush1.msra.mxu0 0.0
        %1456 = vmatprep.subr.mxu0 0.0
        %1457 = vmatpush1.msra.mxu0 0.0
        %1458 = vmatprep.subr.mxu0 0.0
        %1459 = vmatpush1.msra.mxu0 0.0
        %1460 = vmatprep.mubr.f32.mxu0 0.0
        %v1461 = vand.u32 %v1232, 4294901760
        %v1462 = vsub.f32 %v1232, %v1461
        %1463 = vmatmul.mubr.f32.gmra.mrb[0].mxu0 %v1462
        %v1464 = vpop.f32.mrb[0].mxu0
        %v1465 = vadd.f32 %v1389, %v1464
        %v1466 = vpop.f32.mrb[0].mxu0
        %1467 = vdwg.mxu0
        %1468 = vmatprep.subr.mxu0 0.0
        %v1469 = vand.u32 %v1229, 4294901760
        %1470 = vmatpush1.msra.mxu0 %v1469
        %1471 = vmatprep.subr.mxu0 0.0
        %v1472 = vand.u32 %v1230, 4294901760
        %1473 = vmatpush1.msra.mxu0 %v1472
        %1474 = vmatprep.subr.mxu0 0.0
        %1475 = vmatpush1.msra.mxu0 0.0
        %1476 = vmatprep.subr.mxu0 0.0
        %1477 = vmatpush1.msra.mxu0 0.0
        %1478 = vmatprep.subr.mxu0 0.0
        %1479 = vmatpush1.msra.mxu0 0.0
        %1480 = vmatprep.subr.mxu0 0.0
        %1481 = vmatpush1.msra.mxu0 0.0
        %1482 = vmatprep.subr.mxu0 0.0
        %1483 = vmatpush1.msra.mxu0 0.0
        %1484 = vmatprep.subr.mxu0 0.0
        %1485 = vmatpush1.msra.mxu0 0.0
        %1486 = vmatprep.subr.mxu0 0.0
        %1487 = vmatpush1.msra.mxu0 0.0
        %1488 = vmatprep.subr.mxu0 0.0
        %1489 = vmatpush1.msra.mxu0 0.0
        %1490 = vmatprep.subr.mxu0 0.0
        %1491 = vmatpush1.msra.mxu0 0.0
        %1492 = vmatprep.subr.mxu0 0.0
        %1493 = vmatpush1.msra.mxu0 0.0
        %1494 = vmatprep.subr.mxu0 0.0
        %1495 = vmatpush1.msra.mxu0 0.0
        %1496 = vmatprep.subr.mxu0 0.0
        %1497 = vmatpush1.msra.mxu0 0.0
        %1498 = vmatprep.subr.mxu0 0.0
        %1499 = vmatpush1.msra.mxu0 0.0
        %1500 = vmatprep.subr.mxu0 0.0
        %1501 = vmatpush1.msra.mxu0 0.0
        %1502 = vmatprep.subr.mxu0 0.0
        %1503 = vmatpush1.msra.mxu0 0.0
        %1504 = vmatprep.subr.mxu0 0.0
        %1505 = vmatpush1.msra.mxu0 0.0
        %1506 = vmatprep.subr.mxu0 0.0
        %1507 = vmatpush1.msra.mxu0 0.0
        %1508 = vmatprep.subr.mxu0 0.0
        %1509 = vmatpush1.msra.mxu0 0.0
        %1510 = vmatprep.subr.mxu0 0.0
        %1511 = vmatpush1.msra.mxu0 0.0
        %1512 = vmatprep.subr.mxu0 0.0
        %1513 = vmatpush1.msra.mxu0 0.0
        %1514 = vmatprep.subr.mxu0 0.0
        %1515 = vmatpush1.msra.mxu0 0.0
        %1516 = vmatprep.subr.mxu0 0.0
        %1517 = vmatpush1.msra.mxu0 0.0
        %1518 = vmatprep.subr.mxu0 0.0
        %1519 = vmatpush1.msra.mxu0 0.0
        %1520 = vmatprep.subr.mxu0 0.0
        %1521 = vmatpush1.msra.mxu0 0.0
        %1522 = vmatprep.subr.mxu0 0.0
        %1523 = vmatpush1.msra.mxu0 0.0
        %1524 = vmatprep.subr.mxu0 0.0
        %1525 = vmatpush1.msra.mxu0 0.0
        %1526 = vmatprep.subr.mxu0 0.0
        %1527 = vmatpush1.msra.mxu0 0.0
        %1528 = vmatprep.subr.mxu0 0.0
        %1529 = vmatpush1.msra.mxu0 0.0
        %1530 = vmatprep.subr.mxu0 0.0
        %1531 = vmatpush1.msra.mxu0 0.0
        %1532 = vmatprep.subr.mxu0 0.0
        %1533 = vmatpush1.msra.mxu0 0.0
        %1534 = vmatprep.mubr.f32.mxu0 0.0
        %v1535 = vand.u32 %v1232, 4294901760
        %v1536 = vsub.f32 %v1232, %v1535
        %v1537 = vand.u32 %v1536, 4294901760
        %1538 = vmatmul.mubr.f32.gmra.mrb[0].mxu0 %v1537
        %v1539 = vpop.f32.mrb[0].mxu0
        %v1540 = vadd.f32 %v1465, %v1539
        %v1541 = vpop.f32.mrb[0].mxu0
        %1542 = vdwg.mxu0
        %1543 = vmatprep.subr.mxu0 0.0
        %v1544 = vand.u32 %v1229, 4294901760
        %v1545 = vsub.f32 %v1229, %v1544
        %v1546 = vand.u32 %v1545, 4294901760
        %1547 = vmatpush1.msra.mxu0 %v1546
        %1548 = vmatprep.subr.mxu0 0.0
        %v1549 = vand.u32 %v1230, 4294901760
        %v1550 = vsub.f32 %v1230, %v1549
        %v1551 = vand.u32 %v1550, 4294901760
        %1552 = vmatpush1.msra.mxu0 %v1551
        %1553 = vmatprep.subr.mxu0 0.0
        %1554 = vmatpush1.msra.mxu0 0.0
        %1555 = vmatprep.subr.mxu0 0.0
        %1556 = vmatpush1.msra.mxu0 0.0
        %1557 = vmatprep.subr.mxu0 0.0
        %1558 = vmatpush1.msra.mxu0 0.0
        %1559 = vmatprep.subr.mxu0 0.0
        %1560 = vmatpush1.msra.mxu0 0.0
        %1561 = vmatprep.subr.mxu0 0.0
        %1562 = vmatpush1.msra.mxu0 0.0
        %1563 = vmatprep.subr.mxu0 0.0
        %1564 = vmatpush1.msra.mxu0 0.0
        %1565 = vmatprep.subr.mxu0 0.0
        %1566 = vmatpush1.msra.mxu0 0.0
        %1567 = vmatprep.subr.mxu0 0.0
        %1568 = vmatpush1.msra.mxu0 0.0
        %1569 = vmatprep.subr.mxu0 0.0
        %1570 = vmatpush1.msra.mxu0 0.0
        %1571 = vmatprep.subr.mxu0 0.0
        %1572 = vmatpush1.msra.mxu0 0.0
        %1573 = vmatprep.subr.mxu0 0.0
        %1574 = vmatpush1.msra.mxu0 0.0
        %1575 = vmatprep.subr.mxu0 0.0
        %1576 = vmatpush1.msra.mxu0 0.0
        %1577 = vmatprep.subr.mxu0 0.0
        %1578 = vmatpush1.msra.mxu0 0.0
        %1579 = vmatprep.subr.mxu0 0.0
        %1580 = vmatpush1.msra.mxu0 0.0
        %1581 = vmatprep.subr.mxu0 0.0
        %1582 = vmatpush1.msra.mxu0 0.0
        %1583 = vmatprep.subr.mxu0 0.0
        %1584 = vmatpush1.msra.mxu0 0.0
        %1585 = vmatprep.subr.mxu0 0.0
        %1586 = vmatpush1.msra.mxu0 0.0
        %1587 = vmatprep.subr.mxu0 0.0
        %1588 = vmatpush1.msra.mxu0 0.0
        %1589 = vmatprep.subr.mxu0 0.0
        %1590 = vmatpush1.msra.mxu0 0.0
        %1591 = vmatprep.subr.mxu0 0.0
        %1592 = vmatpush1.msra.mxu0 0.0
        %1593 = vmatprep.subr.mxu0 0.0
        %1594 = vmatpush1.msra.mxu0 0.0
        %1595 = vmatprep.subr.mxu0 0.0
        %1596 = vmatpush1.msra.mxu0 0.0
        %1597 = vmatprep.subr.mxu0 0.0
        %1598 = vmatpush1.msra.mxu0 0.0
        %1599 = vmatprep.subr.mxu0 0.0
        %1600 = vmatpush1.msra.mxu0 0.0
        %1601 = vmatprep.subr.mxu0 0.0
        %1602 = vmatpush1.msra.mxu0 0.0
        %1603 = vmatprep.subr.mxu0 0.0
        %1604 = vmatpush1.msra.mxu0 0.0
        %1605 = vmatprep.subr.mxu0 0.0
        %1606 = vmatpush1.msra.mxu0 0.0
        %1607 = vmatprep.subr.mxu0 0.0
        %1608 = vmatpush1.msra.mxu0 0.0
        %1609 = vmatprep.subr.mxu0 0.0
        %1610 = vmatpush1.msra.mxu0 0.0
        %1611 = vmatprep.subr.mxu0 0.0
        %1612 = vmatpush1.msra.mxu0 0.0
        %1613 = vmatprep.mubr.f32.mxu0 0.0
        %v1614 = vand.u32 %v1232, 4294901760
        %1615 = vmatmul.mubr.f32.gmra.mrb[0].mxu0 %v1614
        %v1616 = vpop.f32.mrb[0].mxu0
        %v1617 = vadd.f32 %v1540, %v1616
        %v1618 = vpop.f32.mrb[0].mxu0
        %1619 = vdwg.mxu0
        %1620 = vmatprep.subr.mxu0 0.0
        %v1621 = vand.u32 %v1229, 4294901760
        %1622 = vmatpush1.msra.mxu0 %v1621
        %1623 = vmatprep.subr.mxu0 0.0
        %v1624 = vand.u32 %v1230, 4294901760
        %1625 = vmatpush1.msra.mxu0 %v1624
        %1626 = vmatprep.subr.mxu0 0.0
        %1627 = vmatpush1.msra.mxu0 0.0
        %1628 = vmatprep.subr.mxu0 0.0
        %1629 = vmatpush1.msra.mxu0 0.0
        %1630 = vmatprep.subr.mxu0 0.0
        %1631 = vmatpush1.msra.mxu0 0.0
        %1632 = vmatprep.subr.mxu0 0.0
        %1633 = vmatpush1.msra.mxu0 0.0
        %1634 = vmatprep.subr.mxu0 0.0
        %1635 = vmatpush1.msra.mxu0 0.0
        %1636 = vmatprep.subr.mxu0 0.0
        %1637 = vmatpush1.msra.mxu0 0.0
        %1638 = vmatprep.subr.mxu0 0.0
        %1639 = vmatpush1.msra.mxu0 0.0
        %1640 = vmatprep.subr.mxu0 0.0
        %1641 = vmatpush1.msra.mxu0 0.0
        %1642 = vmatprep.subr.mxu0 0.0
        %1643 = vmatpush1.msra.mxu0 0.0
        %1644 = vmatprep.subr.mxu0 0.0
        %1645 = vmatpush1.msra.mxu0 0.0
        %1646 = vmatprep.subr.mxu0 0.0
        %1647 = vmatpush1.msra.mxu0 0.0
        %1648 = vmatprep.subr.mxu0 0.0
        %1649 = vmatpush1.msra.mxu0 0.0
        %1650 = vmatprep.subr.mxu0 0.0
        %1651 = vmatpush1.msra.mxu0 0.0
        %1652 = vmatprep.subr.mxu0 0.0
        %1653 = vmatpush1.msra.mxu0 0.0
        %1654 = vmatprep.subr.mxu0 0.0
        %1655 = vmatpush1.msra.mxu0 0.0
        %1656 = vmatprep.subr.mxu0 0.0
        %1657 = vmatpush1.msra.mxu0 0.0
        %1658 = vmatprep.subr.mxu0 0.0
        %1659 = vmatpush1.msra.mxu0 0.0
        %1660 = vmatprep.subr.mxu0 0.0
        %1661 = vmatpush1.msra.mxu0 0.0
        %1662 = vmatprep.subr.mxu0 0.0
        %1663 = vmatpush1.msra.mxu0 0.0
        %1664 = vmatprep.subr.mxu0 0.0
        %1665 = vmatpush1.msra.mxu0 0.0
        %1666 = vmatprep.subr.mxu0 0.0
        %1667 = vmatpush1.msra.mxu0 0.0
        %1668 = vmatprep.subr.mxu0 0.0
        %1669 = vmatpush1.msra.mxu0 0.0
        %1670 = vmatprep.subr.mxu0 0.0
        %1671 = vmatpush1.msra.mxu0 0.0
        %1672 = vmatprep.subr.mxu0 0.0
        %1673 = vmatpush1.msra.mxu0 0.0
        %1674 = vmatprep.subr.mxu0 0.0
        %1675 = vmatpush1.msra.mxu0 0.0
        %1676 = vmatprep.subr.mxu0 0.0
        %1677 = vmatpush1.msra.mxu0 0.0
        %1678 = vmatprep.subr.mxu0 0.0
        %1679 = vmatpush1.msra.mxu0 0.0
        %1680 = vmatprep.subr.mxu0 0.0
        %1681 = vmatpush1.msra.mxu0 0.0
        %1682 = vmatprep.subr.mxu0 0.0
        %1683 = vmatpush1.msra.mxu0 0.0
        %1684 = vmatprep.subr.mxu0 0.0
        %1685 = vmatpush1.msra.mxu0 0.0
        %1686 = vmatprep.mubr.f32.mxu0 0.0
        %v1687 = vand.u32 %v1232, 4294901760
        %1688 = vmatmul.mubr.f32.gmra.mrb[0].mxu0 %v1687
        %v1689 = vpop.f32.mrb[0].mxu0
        %v1690 = vadd.f32 %v1617, %v1689
        %v1691 = vpop.f32.mrb[0].mxu0
        %1692 = vdwg.mxu0
        %1694 = vrot.lane.b32.xlu0 %v1209, 40
        %v1695 = vpop.permute.xlu0 %1694
        %1698 = vrot.lane.b32.xlu0 %v1690, 56
        %v1699 = vpop.permute.xlu0 %1698
        %1702 = vrot.lane.b32.xlu0 %v1206, 48
        %v1703 = vpop.permute.xlu0 %1702
        %v1705 = vsel %vm707, %v701, %v1695
        %vm1706 = vcmask 457728
        %v1707 = vsel %vm1706, %v1705, %v1699
        %vm1708 = vcmask 523264
        %v1709 = vsel %vm1708, %v1707, %v1703
        %vm1710 = vcmask 588800
        %v1711 = vsel %vm1710, %v1709, 0.0
        %1712 = vst [vmem:[%s215] sm:$0xff] %v1711
        %s1713 = sand.u32 %s137, 1
        %s1714 = scalar_lea.sflag [#allocation3], %s1713
        %s1715 = sand.u32 %s137, 1
        %s1716 = smul.addr %s1715, 8
        %s1717 = scalar_lea.vmem [#allocation2], %s1716
        // Predicated region
        $region41: #{tpu_custom_call.1} parent=39 // pred_check
          %p1718 = pneg %p147
        $region42: #{tpu_custom_call.1} parent=39 // pred_check_branch
          %1720 = sbr.rel (%p1718) target = $region44
        $region43: #{tpu_custom_call.1} parent=39 // pred_region
          %s1722 = ssub.s32 128, 128
          %1723 = vsyncadd %s1714, %s1722
          %s1724 = smul.addr %s19, 128
          %s1725 = scalar_lea.hbm %s5, %s1724
          %s1727 = sshll.u32 %s1717, 4
          %s1728 = int_to_ptr.vmem [resolvable:$true] %s1727
          %1730 = dma.vmem_to_hbm [thread:$0]  %s1728, 128, %s1725, %s1714
        $region44: #{tpu_custom_call.1} parent=39 // pred_fallthru
          _
      $region40: #{tpu_custom_call.1} parent=5 // pred_fallthru
        _
      %p1731 = scmp.le.s32.totalorder 2, %s14
      // Predicated region
      $region45: #{tpu_custom_call.1} parent=5 // pred_check
        %p1732 = pneg %p1731
      $region46: #{tpu_custom_call.1} parent=5 // pred_check_branch
        %1734 = sbr.rel (%p1732) target = $region48
      $region47: #{tpu_custom_call.1} parent=5 // pred_region
        %s1735 = ssub.s32 %s14, 2
        // Predicated region
        $region49: #{tpu_custom_call.1} parent=47 // pred_check
          %p1736 = pneg %p153
        $region50: #{tpu_custom_call.1} parent=47 // pred_check_branch
          %1738 = sbr.rel (%p1736) target = $region52
        $region51: #{tpu_custom_call.1} parent=47 // pred_region
          %s1739 = sand.u32 %s138, 1
          %s1740 = scalar_lea.sflag [#allocation3], %s1739
          %s1741 = sand.u32 %s138, 1
          %s1742 = smul.addr %s1741, 8
          %s1743 = scalar_lea.vmem [#allocation2], %s1742
          %1744 = dma.done %s1740, 128
        $region52: #{tpu_custom_call.1} parent=47 // pred_fallthru
          _
      $region48: #{tpu_custom_call.1} parent=5 // pred_fallthru
        _
    $region6: #{tpu_custom_call.1} parent=1 // loop_footer
      %s18 = sadd.s32 1, %s14
    $region7: #{tpu_custom_call.1} parent=1 // loop_footer_branch
      %13 = sbr.rel target = $region3
    $region8: #{tpu_custom_call.1} parent=1 // loop_exit
      _
    %1745 = vsyncpa [#allocation3], 1
    %s1746 = scalar_lea.sflag [#allocation3], 1
    %1747 = vsyncpa %s1746, 1

</llo_original>
